<compile_context>
chip_gen: v7x
topology: tpu7x:2x2x1
jax: 0.10.0
libtpu: 0.0.40
codegen_flags: <defaults>
</compile_context>

<pallas_src>
import math
import functools

import jax
import jax.numpy as jnp
from jax.experimental import pallas as pl
from jax.experimental.pallas import tpu as pltpu


# ----------------------------- small helpers --------------------------------

def _round_up(n, m):
    return ((n + m - 1) // m) * m


def _silu(y, approx):
    # y * sigmoid(y).  On the perf path the reciprocal is routed to the EUP
    # (approx=True), freeing VALU slots in this VPU-heavy kernel.
    z = 1.0 + jnp.exp(-y)
    if approx:
        return y * pl.reciprocal(z, approx=True)
    return y / z


def _tree_sum(xs):
    # Tree-add so the 4 VALU slots see short dependency chains.
    while len(xs) > 1:
        nxt = [xs[i] + xs[i + 1] for i in range(0, len(xs) - 1, 2)]
        if len(xs) % 2:
            nxt.append(xs[-1])
        xs = nxt
    return xs[0]


# ------------------------------- the kernel ---------------------------------

def _mv2_kernel(*refs, TH, Wout_p, stride, has_expand, use_res, approx):
    if has_expand:
        (xd_hbm, w1_ref, wdw_ref, b2_ref, w3_ref, b3_ref,
         out_ref, xt_ref, hp_ref, dma_sem) = refs
    else:
        (xd_hbm, wdw_ref, b2_ref, w3_ref, b3_ref,
         out_ref, xt_ref, hp_ref, dma_sem) = refs

    f32 = jnp.float32
    s = stride
    ss, THd, Wd, Cin_p = xt_ref.shape          # ss == stride*stride parity planes
    Chid_p = hp_ref.shape[-1]
    Cout_p = out_ref.shape[-1]

    n = pl.program_id(0)
    t = pl.program_id(1)

    # ---- fetch this (sample, row-tile) haloed input window: HBM -> VMEM ----
    # TODO(synk): double-buffer this DMA across row tiles to overlap it with compute.
    cp = pltpu.make_async_copy(
        xd_hbm.at[n, :, pl.ds(t * TH, THd), :, :], xt_ref, dma_sem)
    cp.start()
    cp.wait()

    # ---- 1x1 expand conv (MXU) + folded BN1 + SiLU --------------------------
    # BN1 bias rides the spare mask channel of x, so h1 == 0 on halo/padding.
    if has_expand:
        xm = xt_ref[...].reshape(ss * THd * Wd, Cin_p)
        y1 = jnp.dot(xm, w1_ref[...], preferred_element_type=f32)
        h1 = _silu(y1, approx)
        hp_ref[...] = h1.reshape(ss, THd, Wd, Chid_p).astype(hp_ref.dtype)
    else:
        hp_ref[...] = xt_ref[...].astype(hp_ref.dtype)

    # ---- 3x3 depthwise conv (stride folded into the de-interleaved layout) --
    # 9 contiguous tap slices, BN2 scale pre-folded into the tap weights,
    # f32 tree-accumulate on the VPU.
    taps = []
    for dy in range(3):
        for dx in range(3):
            p = (dy % s) * s + (dx % s)
            tap = hp_ref[p, pl.ds(dy // s, TH), pl.ds(dx // s, Wout_p), :]
            taps.append(tap * wdw_ref[dy * 3 + dx][None])     # f32 via promotion
    y2 = _tree_sum(taps) + b2_ref[...][None]
    h2 = _silu(y2, approx).astype(w3_ref.dtype)

    # ---- 1x1 projection conv (MXU) + folded BN3 (+ residual) ----------------
    y3 = jnp.dot(h2.reshape(TH * Wout_p, Chid_p), w3_ref[...],
                 preferred_element_type=f32)
    y3 = y3.reshape(TH, Wout_p, Cout_p) + b3_ref[...][None]
    if use_res:
        # NOTE: the residual reads the (mxu_dtype) staged input; with bf16 MXU the
        # skip connection is bf16-quantized (exact on the f32 path).
        y3 = y3 + xt_ref[0, pl.ds(1, TH), pl.ds(1, Wout_p), :Cout_p].astype(f32)
    out_ref[0] = y3.astype(out_ref.dtype)


# ------------------------------- the wrapper ---------------------------------

def mv2block_pallas(x_nchw, params, stride, expansion=4, *,
                    mxu_dtype=jnp.bfloat16, dw_dtype=None, out_dtype=None,
                    block_h=8, approx_silu=None):
    """Forward of MV2Block (inference-mode BN). Input/output are NCHW."""
    x = jnp.transpose(x_nchw, (0, 2, 3, 1)).astype(jnp.float32)     # NHWC
    N, H, W, Cin = x.shape
    s = int(stride)
    assert s in (1, 2)
    has_expand = expansion != 1
    hidden = params["w_dw"].shape[0]
    Cout = params["w3"].shape[0]
    use_res = (s == 1) and (Cin == Cout)
    eps = 1e-5
    if not has_expand:
        assert hidden == Cin, "expansion==1 requires hidden_dim == inputs"

    if dw_dtype is None:
        dw_dtype = mxu_dtype     # TODO(synk): keep this f32 on v5e (no bf16 VPU).
    if out_dtype is None:
        out_dtype = mxu_dtype
    if approx_silu is None:
        approx_silu = (mxu_dtype != jnp.float32)

    Hout = (H - 1) // s + 1
    Wout = (W - 1) // s + 1
    ex = 2 // s                              # extra de-interleaved halo rows/cols
    TH = max(1, min(block_h, Hout))          # output rows per grid step
    T = -(-Hout // TH)                       # number of row tiles
    THd = TH + ex                            # haloed de-interleaved rows per tile
    Wout_p = _round_up(Wout, 8)              # sublane-friendly output width
    Wd = _round_up(Wout_p + ex, 8)           # de-interleaved input width incl. halo
    Hd = T * TH + ex                         # total de-interleaved input rows

    # Lane-dense channel padding.  With the expand conv we reserve one extra input
    # "channel" carrying the interior mask (its weight row = folded BN1 bias), so the
    # hidden activation is exactly zero on the halo without any in-kernel masking.
    Cin_p = _round_up(Cin + 1, 128) if has_expand else _round_up(Cin, 128)
    Chid_p = _round_up(hidden, 128)
    Cout_p = _round_up(Cout, 128)

    def fold_bn(g, b, m, v):
        sc = g * jax.lax.rsqrt(v + eps)
        return sc, b - m * sc

    # ---- folded / padded parameters (cheap wrapper-side work) ----
    in_specs = [pl.BlockSpec(memory_space=pl.ANY)]     # xd stays in HBM; kernel DMAs
    args = []

    if has_expand:
        s1, b1 = fold_bn(params["g1"], params["b1"], params["m1"], params["v1"])
        w1 = params["w1"][:, :, 0, 0].T * s1[None, :]            # (Cin, hidden)
        w1m = jnp.zeros((Cin_p, Chid_p), jnp.float32)
        w1m = w1m.at[:Cin, :hidden].set(w1)
        w1m = w1m.at[Cin, :hidden].set(b1)                       # bias on mask channel
        w1m = w1m.astype(mxu_dtype)
        in_specs.append(pl.BlockSpec((Cin_p, Chid_p), lambda n, t: (0, 0)))
        args.append(w1m)

    s2, b2 = fold_bn(params["g2"], params["b2"], params["m2"], params["v2"])
    wdw = jnp.transpose(params["w_dw"][:, 0, :, :], (1, 2, 0)).reshape(9, hidden)
    wdw = wdw * s2[None, :]                                      # fold BN2 scale
    wdw = jnp.pad(wdw, ((0, 0), (0, Chid_p - hidden)))[:, None, :]   # (9,1,Chid_p) f32
    b2p = jnp.pad(b2, (0, Chid_p - hidden)).reshape(1, Chid_p)

    s3, b3 = fold_bn(params["g3"], params["b3"], params["m3"], params["v3"])
    w3 = params["w3"][:, :, 0, 0].T * s3[None, :]                # (hidden, Cout)
    w3m = jnp.zeros((Chid_p, Cout_p), jnp.float32).at[:hidden, :Cout].set(w3)
    w3m = w3m.astype(mxu_dtype)
    b3p = jnp.pad(b3, (0, Cout_p - Cout)).reshape(1, Cout_p)

    # NOTE: these constant-index weight specs could be single-buffered
    # (pipeline_mode=pl.Buffered(1)) to save VMEM on v7x; left default for portability.
    in_specs += [
        pl.BlockSpec((9, 1, Chid_p), lambda n, t: (0, 0, 0)),    # folded depthwise w
        pl.BlockSpec((1, Chid_p), lambda n, t: (0, 0)),          # b2
        pl.BlockSpec((Chid_p, Cout_p), lambda n, t: (0, 0)),     # folded w3
        pl.BlockSpec((1, Cout_p), lambda n, t: (0, 0)),          # b3
    ]
    args += [wdw, b2p, w3m, b3p]

    # Zero-padded NHWC input: 1px top/left halo, padded out to s*Hd x s*Wd, channels to
    # Cin_p (+ interior-mask channel), then de-interleaved by the stride so every
    # depthwise tap in the kernel is a contiguous slice.
    xpad = jnp.zeros((N, s * Hd, s * Wd, Cin_p), jnp.float32)
    xpad = xpad.at[:, 1:H + 1, 1:W + 1, :Cin].set(x)
    if has_expand:
        xpad = xpad.at[:, 1:H + 1, 1:W + 1, Cin].set(1.0)        # interior mask channel
    xd = xpad.reshape(N, Hd, s, Wd, s, Cin_p).transpose(0, 2, 4, 1, 3, 5)
    xd = xd.reshape(N, s * s, Hd, Wd, Cin_p).astype(mxu_dtype)

    kernel = functools.partial(
        _mv2_kernel, TH=TH, Wout_p=Wout_p, stride=s,
        has_expand=has_expand, use_res=use_res, approx=approx_silu)

    grid_spec = pltpu.PrefetchScalarGridSpec(
        num_scalar_prefetch=0,
        grid=(N, T),
        in_specs=in_specs,
        out_specs=pl.BlockSpec((1, TH, Wout_p, Cout_p), lambda n, t: (n, t, 0, 0)),
        scratch_shapes=[
            pltpu.VMEM((s * s, THd, Wd, Cin_p), mxu_dtype),      # haloed input tile
            pltpu.VMEM((s * s, THd, Wd, Chid_p), dw_dtype),      # hidden activation tile
            pltpu.SemaphoreType.DMA,
        ],
    )

    out = pl.pallas_call(
        kernel,
        out_shape=jax.ShapeDtypeStruct((N, T * TH, Wout_p, Cout_p), out_dtype),
        grid_spec=grid_spec,
        compiler_params=pltpu.CompilerParams(
            dimension_semantics=("parallel", "parallel"),
            vmem_limit_bytes=64 * 1024 * 1024),
    )(xd, *args)

    # Crop the padding and return NCHW to match the torch module's contract.
    # TODO(synk): in a real pipeline keep the NHWC padded layout end-to-end (and fuse
    # the crop into the consumer) to avoid this extra HBM round trip.
    out = out[:, :Hout, :Wout, :Cout]
    return jnp.transpose(out, (0, 3, 1, 2))                      # NCHW


# --------------------------- pure-JAX reference ------------------------------

def mv2block_ref(x_nchw, params, stride, expansion=4):
    x = jnp.transpose(x_nchw, (0, 2, 3, 1)).astype(jnp.float32)
    eps = 1e-5

    def bn(y, g, b, m, v):
        return (y - m) * jax.lax.rsqrt(v + eps) * g + b

    def conv(y, w, s, p, groups=1):
        wh = jnp.transpose(w, (2, 3, 1, 0))
        return jax.lax.conv_general_dilated(
            y, wh, (s, s), [(p, p), (p, p)],
            dimension_numbers=("NHWC", "HWIO", "NHWC"),
            feature_group_count=groups)

    h = x
    if expansion != 1:
        h = jax.nn.silu(bn(conv(h, params["w1"], 1, 0),
                           params["g1"], params["b1"], params["m1"], params["v1"]))
    hidden = params["w_dw"].shape[0]
    h = jax.nn.silu(bn(conv(h, params["w_dw"], stride, 1, groups=hidden),
                       params["g2"], params["b2"], params["m2"], params["v2"]))
    y = bn(conv(h, params["w3"], 1, 0),
           params["g3"], params["b3"], params["m3"], params["v3"])
    if stride == 1 and x.shape[-1] == y.shape[-1]:
        y = y + x
    return jnp.transpose(y, (0, 3, 1, 2))


# --------------------------------- test --------------------------------------

def make_params(key, inputs, outputs, expansion):
    hidden = int(inputs * expansion)
    ks = jax.random.split(key, 6)

    def conv_init(k, shape):
        fan_in = shape[1] * shape[2] * shape[3]
        return jax.random.normal(k, shape, jnp.float32) / math.sqrt(max(fan_in, 1))

    def bn_init(k, c):
        k1, k2, k3, k4 = jax.random.split(k, 4)
        return (1.0 + 0.1 * jax.random.normal(k1, (c,), jnp.float32),
                0.1 * jax.random.normal(k2, (c,), jnp.float32),
                0.1 * jax.random.normal(k3, (c,), jnp.float32),
                0.5 + jax.random.uniform(k4, (c,), jnp.float32))

    p = {}
    if expansion != 1:
        p["w1"] = conv_init(ks[0], (hidden, inputs, 1, 1))
        p["g1"], p["b1"], p["m1"], p["v1"] = bn_init(ks[1], hidden)
    p["w_dw"] = conv_init(ks[2], (hidden, 1, 3, 3))
    p["g2"], p["b2"], p["m2"], p["v2"] = bn_init(ks[3], hidden)
    p["w3"] = conv_init(ks[4], (outputs, hidden, 1, 1))
    p["g3"], p["b3"], p["m3"], p["v3"] = bn_init(ks[5], outputs)
    return p


if __name__ == "__main__":
    # (inputs, outputs, stride, expansion): residual, stride-2, and expansion==1 paths.
    configs = [(4, 4, 1, 4), (4, 8, 2, 4), (8, 8, 1, 1)]
    key = jax.random.PRNGKey(0)

    for idx, (cin, cout, stride, expansion) in enumerate(configs):
        kp, kx, key = jax.random.split(key, 3)
        params = make_params(kp, cin, cout, expansion)
        x = jax.random.normal(kx, (2, cin, 16, 16), jnp.float32)

        ref = mv2block_ref(x, params, stride, expansion)

        # f32 MXU path (exact SiLU): strict check.  block_h=8 exercises multi-tile rows.
        out = jax.block_until_ready(
            mv2block_pallas(x, params, stride, expansion,
                            mxu_dtype=jnp.float32, block_h=8))
        assert out.shape == ref.shape, (out.shape, ref.shape)
        err = float(jnp.max(jnp.abs(out.astype(jnp.float32) - ref)))
        assert err < 1e-3, f"config {idx}: f32 max abs error {err}"

        # bf16 MXU / bf16-scratch / approx-SiLU path (default perf config).
        out_bf = jax.block_until_ready(
            mv2block_pallas(x, params, stride, expansion, block_h=8))
        nerr = (float(jnp.max(jnp.abs(out_bf.astype(jnp.float32) - ref)))
                / (float(jnp.max(jnp.abs(ref))) + 1e-6))
        assert nerr < 4e-2, f"config {idx}: bf16 relative error {nerr}"

    print("KERNEL_OK")
</pallas_src>

<mosaic_0001>
module attributes {stable_mosaic.version = 11 : i64} {
  func.func @_mv2_kernel(%arg0: i32, %arg1: i32, %arg2: memref<2x1x18x24x128xf32, #tpu.memory_space<any>>, %arg3: memref<128x128xf32, #tpu.memory_space<vmem>>, %arg4: memref<9x1x128xf32, #tpu.memory_space<vmem>>, %arg5: memref<1x128xf32, #tpu.memory_space<vmem>>, %arg6: memref<128x128xf32, #tpu.memory_space<vmem>>, %arg7: memref<1x128xf32, #tpu.memory_space<vmem>>, %arg8: memref<1x8x16x128xf32, #tpu.memory_space<vmem>>, %arg9: memref<1x10x24x128xf32, #tpu.memory_space<vmem>>, %arg10: memref<1x10x24x128xf32, #tpu.memory_space<vmem>>, %arg11: memref<!tpu.dma_semaphore, #tpu.memory_space<semaphore_mem>>) attributes {dimension_semantics = [#tpu.dimension_semantics<parallel>, #tpu.dimension_semantics<parallel>], iteration_bounds = array<i64: 2, 2>, scalar_prefetch = 0 : i64, scratch_operands = 3 : i64, tpu.core_type = #tpu.core_type<tc>, window_params = [{}, {pipeline_mode = #tpu.pipeline_mode<synchronous>, transform_indices = @transform_1, window_bounds = array<i64: 128, 128>}, {pipeline_mode = #tpu.pipeline_mode<synchronous>, transform_indices = @transform_2, window_bounds = array<i64: 9, 1, 128>}, {pipeline_mode = #tpu.pipeline_mode<synchronous>, transform_indices = @transform_3, window_bounds = array<i64: 1, 128>}, {pipeline_mode = #tpu.pipeline_mode<synchronous>, transform_indices = @transform_4, window_bounds = array<i64: 128, 128>}, {pipeline_mode = #tpu.pipeline_mode<synchronous>, transform_indices = @transform_5, window_bounds = array<i64: 1, 128>}, {transform_indices = @transform_6, window_bounds = array<i64: 1, 8, 16, 128>}]} {
    %c8_i32 = arith.constant 8 : i32
    %0 = arith.muli %arg1, %c8_i32 : i32
    %c0_i32 = arith.constant 0 : i32
    %c0_i32_0 = arith.constant 0 : i32
    %c0_i32_1 = arith.constant 0 : i32
    %1 = tpu.memref_slice %arg2[%arg0, %c0_i32, %0, %c0_i32_0, %c0_i32_1] : memref<2x1x18x24x128xf32, #tpu.memory_space<any>> -> memref<1x1x10x24x128xf32, #tpu.memory_space<any>>
    %2 = tpu.memref_squeeze %1 : memref<1x1x10x24x128xf32, #tpu.memory_space<any>> -> memref<1x10x24x128xf32, #tpu.memory_space<any>>
    tpu.enqueue_dma source(%2 : memref<1x10x24x128xf32, #tpu.memory_space<any>>) target(%arg9 : memref<1x10x24x128xf32, #tpu.memory_space<vmem>>) target_semaphore(%arg11 : memref<!tpu.dma_semaphore, #tpu.memory_space<semaphore_mem>>)
    %c0_i32_2 = arith.constant 0 : i32
    %c0_i32_3 = arith.constant 0 : i32
    %c0_i32_4 = arith.constant 0 : i32
    %3 = tpu.memref_slice %arg2[%arg0, %c0_i32_2, %0, %c0_i32_3, %c0_i32_4] : memref<2x1x18x24x128xf32, #tpu.memory_space<any>> -> memref<1x1x10x24x128xf32, #tpu.memory_space<any>>
    %4 = tpu.memref_squeeze %3 : memref<1x1x10x24x128xf32, #tpu.memory_space<any>> -> memref<1x10x24x128xf32, #tpu.memory_space<any>>
    tpu.wait_dma2 semaphore(%arg11 : memref<!tpu.dma_semaphore, #tpu.memory_space<semaphore_mem>>) src(%4 : memref<1x10x24x128xf32, #tpu.memory_space<any>>) dst(%arg9 : memref<1x10x24x128xf32, #tpu.memory_space<vmem>>)
    %c0 = arith.constant 0 : index
    %c0_5 = arith.constant 0 : index
    %c0_6 = arith.constant 0 : index
    %c0_7 = arith.constant 0 : index
    %5 = vector.load %arg9[%c0, %c0_5, %c0_6, %c0_7] : memref<1x10x24x128xf32, #tpu.memory_space<vmem>>, vector<1x10x24x128xf32>
    %6 = vector.shape_cast %5 : vector<1x10x24x128xf32> to vector<240x128xf32>
    %c0_8 = arith.constant 0 : index
    %c0_9 = arith.constant 0 : index
    %7 = vector.load %arg3[%c0_8, %c0_9] : memref<128x128xf32, #tpu.memory_space<vmem>>, vector<128x128xf32>
    %cst = arith.constant dense<0.000000e+00> : vector<240x128xf32>
    %8 = tpu.matmul %6, %7, %cst {dimension_numbers = #tpu.dot_dimension_numbers<[1], [0], [0], [1], [0, 0, 1, 1], [], []>} : vector<240x128xf32>, vector<128x128xf32>, vector<240x128xf32> -> vector<240x128xf32>
    %cst_10 = arith.constant 0.000000e+00 : f32
    %9 = vector.broadcast %cst_10 : f32 to vector<240x128xf32>
    %10 = arith.subf %9, %8 : vector<240x128xf32>
    %11 = math.exp %10 : vector<240x128xf32>
    %cst_11 = arith.constant 1.000000e+00 : f32
    %12 = vector.broadcast %cst_11 : f32 to vector<240x128xf32>
    %13 = arith.addf %12, %11 : vector<240x128xf32>
    %14 = arith.divf %8, %13 : vector<240x128xf32>
    %15 = vector.shape_cast %14 : vector<240x128xf32> to vector<1x10x24x128xf32>
    %c0_12 = arith.constant 0 : index
    %c0_13 = arith.constant 0 : index
    %c0_14 = arith.constant 0 : index
    %c0_15 = arith.constant 0 : index
    %16 = vector.load %arg10[%c0_12, %c0_13, %c0_14, %c0_15] : memref<1x10x24x128xf32, #tpu.memory_space<vmem>>, vector<1x10x24x128xf32>
    tpu.vector_store %arg10[%c0_12, %c0_13, %c0_14, %c0_15], %15 {strides = array<i32>} : memref<1x10x24x128xf32, #tpu.memory_space<vmem>>, vector<1x10x24x128xf32>,
    %c0_16 = arith.constant 0 : index
    %c0_17 = arith.constant 0 : index
    %c0_18 = arith.constant 0 : index
    %c0_19 = arith.constant 0 : index
    %17 = vector.load %arg10[%c0_16, %c0_17, %c0_18, %c0_19] : memref<1x10x24x128xf32, #tpu.memory_space<vmem>>, vector<1x8x16x128xf32>
    %18 = vector.shape_cast %17 : vector<1x8x16x128xf32> to vector<8x16x128xf32>
    %c0_20 = arith.constant 0 : index
    %c0_21 = arith.constant 0 : index
    %c0_22 = arith.constant 0 : index
    %19 = vector.load %arg4[%c0_20, %c0_21, %c0_22] : memref<9x1x128xf32, #tpu.memory_space<vmem>>, vector<1x1x128xf32>
    %20 = vector.shape_cast %19 : vector<1x1x128xf32> to vector<1x128xf32>
    %21 = vector.shape_cast %20 : vector<1x128xf32> to vector<1x1x128xf32>
    %22 = vector.broadcast %21 : vector<1x1x128xf32> to vector<8x16x128xf32>
    %23 = arith.mulf %18, %22 : vector<8x16x128xf32>
    %c0_23 = arith.constant 0 : index
    %c0_24 = arith.constant 0 : index
    %c1 = arith.constant 1 : index
    %c0_25 = arith.constant 0 : index
    %24 = vector.load %arg10[%c0_23, %c0_24, %c1, %c0_25] : memref<1x10x24x128xf32, #tpu.memory_space<vmem>>, vector<1x8x16x128xf32>
    %25 = vector.shape_cast %24 : vector<1x8x16x128xf32> to vector<8x16x128xf32>
    %c1_26 = arith.constant 1 : index
    %c0_27 = arith.constant 0 : index
    %c0_28 = arith.constant 0 : index
    %26 = vector.load %arg4[%c1_26, %c0_27, %c0_28] : memref<9x1x128xf32, #tpu.memory_space<vmem>>, vector<1x1x128xf32>
    %27 = vector.shape_cast %26 : vector<1x1x128xf32> to vector<1x128xf32>
    %28 = vector.shape_cast %27 : vector<1x128xf32> to vector<1x1x128xf32>
    %29 = vector.broadcast %28 : vector<1x1x128xf32> to vector<8x16x128xf32>
    %30 = arith.mulf %25, %29 : vector<8x16x128xf32>
    %c0_29 = arith.constant 0 : index
    %c0_30 = arith.constant 0 : index
    %c2 = arith.constant 2 : index
    %c0_31 = arith.constant 0 : index
    %31 = vector.load %arg10[%c0_29, %c0_30, %c2, %c0_31] : memref<1x10x24x128xf32, #tpu.memory_space<vmem>>, vector<1x8x16x128xf32>
    %32 = vector.shape_cast %31 : vector<1x8x16x128xf32> to vector<8x16x128xf32>
    %c2_32 = arith.constant 2 : index
    %c0_33 = arith.constant 0 : index
    %c0_34 = arith.constant 0 : index
    %33 = vector.load %arg4[%c2_32, %c0_33, %c0_34] : memref<9x1x128xf32, #tpu.memory_space<vmem>>, vector<1x1x128xf32>
    %34 = vector.shape_cast %33 : vector<1x1x128xf32> to vector<1x128xf32>
    %35 = vector.shape_cast %34 : vector<1x128xf32> to vector<1x1x128xf32>
    %36 = vector.broadcast %35 : vector<1x1x128xf32> to vector<8x16x128xf32>
    %37 = arith.mulf %32, %36 : vector<8x16x128xf32>
    %c0_35 = arith.constant 0 : index
    %c1_36 = arith.constant 1 : index
    %c0_37 = arith.constant 0 : index
    %c0_38 = arith.constant 0 : index
    %38 = vector.load %arg10[%c0_35, %c1_36, %c0_37, %c0_38] : memref<1x10x24x128xf32, #tpu.memory_space<vmem>>, vector<1x8x16x128xf32>
    %39 = vector.shape_cast %38 : vector<1x8x16x128xf32> to vector<8x16x128xf32>
    %c3 = arith.constant 3 : index
    %c0_39 = arith.constant 0 : index
    %c0_40 = arith.constant 0 : index
    %40 = vector.load %arg4[%c3, %c0_39, %c0_40] : memref<9x1x128xf32, #tpu.memory_space<vmem>>, vector<1x1x128xf32>
    %41 = vector.shape_cast %40 : vector<1x1x128xf32> to vector<1x128xf32>
    %42 = vector.shape_cast %41 : vector<1x128xf32> to vector<1x1x128xf32>
    %43 = vector.broadcast %42 : vector<1x1x128xf32> to vector<8x16x128xf32>
    %44 = arith.mulf %39, %43 : vector<8x16x128xf32>
    %c0_41 = arith.constant 0 : index
    %c1_42 = arith.constant 1 : index
    %c1_43 = arith.constant 1 : index
    %c0_44 = arith.constant 0 : index
    %45 = vector.load %arg10[%c0_41, %c1_42, %c1_43, %c0_44] : memref<1x10x24x128xf32, #tpu.memory_space<vmem>>, vector<1x8x16x128xf32>
    %46 = vector.shape_cast %45 : vector<1x8x16x128xf32> to vector<8x16x128xf32>
    %c4 = arith.constant 4 : index
    %c0_45 = arith.constant 0 : index
    %c0_46 = arith.constant 0 : index
    %47 = vector.load %arg4[%c4, %c0_45, %c0_46] : memref<9x1x128xf32, #tpu.memory_space<vmem>>, vector<1x1x128xf32>
    %48 = vector.shape_cast %47 : vector<1x1x128xf32> to vector<1x128xf32>
    %49 = vector.shape_cast %48 : vector<1x128xf32> to vector<1x1x128xf32>
    %50 = vector.broadcast %49 : vector<1x1x128xf32> to vector<8x16x128xf32>
    %51 = arith.mulf %46, %50 : vector<8x16x128xf32>
    %c0_47 = arith.constant 0 : index
    %c1_48 = arith.constant 1 : index
    %c2_49 = arith.constant 2 : index
    %c0_50 = arith.constant 0 : index
    %52 = vector.load %arg10[%c0_47, %c1_48, %c2_49, %c0_50] : memref<1x10x24x128xf32, #tpu.memory_space<vmem>>, vector<1x8x16x128xf32>
    %53 = vector.shape_cast %52 : vector<1x8x16x128xf32> to vector<8x16x128xf32>
    %c5 = arith.constant 5 : index
    %c0_51 = arith.constant 0 : index
    %c0_52 = arith.constant 0 : index
    %54 = vector.load %arg4[%c5, %c0_51, %c0_52] : memref<9x1x128xf32, #tpu.memory_space<vmem>>, vector<1x1x128xf32>
    %55 = vector.shape_cast %54 : vector<1x1x128xf32> to vector<1x128xf32>
    %56 = vector.shape_cast %55 : vector<1x128xf32> to vector<1x1x128xf32>
    %57 = vector.broadcast %56 : vector<1x1x128xf32> to vector<8x16x128xf32>
    %58 = arith.mulf %53, %57 : vector<8x16x128xf32>
    %c0_53 = arith.constant 0 : index
    %c2_54 = arith.constant 2 : index
    %c0_55 = arith.constant 0 : index
    %c0_56 = arith.constant 0 : index
    %59 = vector.load %arg10[%c0_53, %c2_54, %c0_55, %c0_56] : memref<1x10x24x128xf32, #tpu.memory_space<vmem>>, vector<1x8x16x128xf32>
    %60 = vector.shape_cast %59 : vector<1x8x16x128xf32> to vector<8x16x128xf32>
    %c6 = arith.constant 6 : index
    %c0_57 = arith.constant 0 : index
    %c0_58 = arith.constant 0 : index
    %61 = vector.load %arg4[%c6, %c0_57, %c0_58] : memref<9x1x128xf32, #tpu.memory_space<vmem>>, vector<1x1x128xf32>
    %62 = vector.shape_cast %61 : vector<1x1x128xf32> to vector<1x128xf32>
    %63 = vector.shape_cast %62 : vector<1x128xf32> to vector<1x1x128xf32>
    %64 = vector.broadcast %63 : vector<1x1x128xf32> to vector<8x16x128xf32>
    %65 = arith.mulf %60, %64 : vector<8x16x128xf32>
    %c0_59 = arith.constant 0 : index
    %c2_60 = arith.constant 2 : index
    %c1_61 = arith.constant 1 : index
    %c0_62 = arith.constant 0 : index
    %66 = vector.load %arg10[%c0_59, %c2_60, %c1_61, %c0_62] : memref<1x10x24x128xf32, #tpu.memory_space<vmem>>, vector<1x8x16x128xf32>
    %67 = vector.shape_cast %66 : vector<1x8x16x128xf32> to vector<8x16x128xf32>
    %c7 = arith.constant 7 : index
    %c0_63 = arith.constant 0 : index
    %c0_64 = arith.constant 0 : index
    %68 = vector.load %arg4[%c7, %c0_63, %c0_64] : memref<9x1x128xf32, #tpu.memory_space<vmem>>, vector<1x1x128xf32>
    %69 = vector.shape_cast %68 : vector<1x1x128xf32> to vector<1x128xf32>
    %70 = vector.shape_cast %69 : vector<1x128xf32> to vector<1x1x128xf32>
    %71 = vector.broadcast %70 : vector<1x1x128xf32> to vector<8x16x128xf32>
    %72 = arith.mulf %67, %71 : vector<8x16x128xf32>
    %c0_65 = arith.constant 0 : index
    %c2_66 = arith.constant 2 : index
    %c2_67 = arith.constant 2 : index
    %c0_68 = arith.constant 0 : index
    %73 = vector.load %arg10[%c0_65, %c2_66, %c2_67, %c0_68] : memref<1x10x24x128xf32, #tpu.memory_space<vmem>>, vector<1x8x16x128xf32>
    %74 = vector.shape_cast %73 : vector<1x8x16x128xf32> to vector<8x16x128xf32>
    %c8 = arith.constant 8 : index
    %c0_69 = arith.constant 0 : index
    %c0_70 = arith.constant 0 : index
    %75 = vector.load %arg4[%c8, %c0_69, %c0_70] : memref<9x1x128xf32, #tpu.memory_space<vmem>>, vector<1x1x128xf32>
    %76 = vector.shape_cast %75 : vector<1x1x128xf32> to vector<1x128xf32>
    %77 = vector.shape_cast %76 : vector<1x128xf32> to vector<1x1x128xf32>
    %78 = vector.broadcast %77 : vector<1x1x128xf32> to vector<8x16x128xf32>
    %79 = arith.mulf %74, %78 : vector<8x16x128xf32>
    %80 = arith.addf %23, %30 : vector<8x16x128xf32>
    %81 = arith.addf %37, %44 : vector<8x16x128xf32>
    %82 = arith.addf %51, %58 : vector<8x16x128xf32>
    %83 = arith.addf %65, %72 : vector<8x16x128xf32>
    %84 = arith.addf %80, %81 : vector<8x16x128xf32>
    %85 = arith.addf %82, %83 : vector<8x16x128xf32>
    %86 = arith.addf %84, %85 : vector<8x16x128xf32>
    %87 = arith.addf %86, %79 : vector<8x16x128xf32>
    %c0_71 = arith.constant 0 : index
    %c0_72 = arith.constant 0 : index
    %88 = vector.load %arg5[%c0_71, %c0_72] : memref<1x128xf32, #tpu.memory_space<vmem>>, vector<1x128xf32>
    %89 = vector.shape_cast %88 : vector<1x128xf32> to vector<1x1x128xf32>
    %90 = vector.broadcast %89 : vector<1x1x128xf32> to vector<8x16x128xf32>
    %91 = arith.addf %87, %90 : vector<8x16x128xf32>
    %cst_73 = arith.constant 0.000000e+00 : f32
    %92 = vector.broadcast %cst_73 : f32 to vector<8x16x128xf32>
    %93 = arith.subf %92, %91 : vector<8x16x128xf32>
    %94 = math.exp %93 : vector<8x16x128xf32>
    %cst_74 = arith.constant 1.000000e+00 : f32
    %95 = vector.broadcast %cst_74 : f32 to vector<8x16x128xf32>
    %96 = arith.addf %95, %94 : vector<8x16x128xf32>
    %97 = arith.divf %91, %96 : vector<8x16x128xf32>
    %98 = vector.shape_cast %97 : vector<8x16x128xf32> to vector<128x128xf32>
    %c0_75 = arith.constant 0 : index
    %c0_76 = arith.constant 0 : index
    %99 = vector.load %arg6[%c0_75, %c0_76] : memref<128x128xf32, #tpu.memory_space<vmem>>, vector<128x128xf32>
    %cst_77 = arith.constant dense<0.000000e+00> : vector<128x128xf32>
    %100 = tpu.matmul %98, %99, %cst_77 {dimension_numbers = #tpu.dot_dimension_numbers<[1], [0], [0], [1], [0, 0, 1, 1], [], []>} : vector<128x128xf32>, vector<128x128xf32>, vector<128x128xf32> -> vector<128x128xf32>
    %101 = vector.shape_cast %100 : vector<128x128xf32> to vector<8x16x128xf32>
    %c0_78 = arith.constant 0 : index
    %c0_79 = arith.constant 0 : index
    %102 = vector.load %arg7[%c0_78, %c0_79] : memref<1x128xf32, #tpu.memory_space<vmem>>, vector<1x128xf32>
    %103 = vector.shape_cast %102 : vector<1x128xf32> to vector<1x1x128xf32>
    %104 = vector.broadcast %103 : vector<1x1x128xf32> to vector<8x16x128xf32>
    %105 = arith.addf %101, %104 : vector<8x16x128xf32>
    %c0_80 = arith.constant 0 : index
    %c1_81 = arith.constant 1 : index
    %c1_82 = arith.constant 1 : index
    %c0_83 = arith.constant 0 : index
    %106 = vector.load %arg9[%c0_80, %c1_81, %c1_82, %c0_83] : memref<1x10x24x128xf32, #tpu.memory_space<vmem>>, vector<1x8x16x128xf32>
    %107 = vector.shape_cast %106 : vector<1x8x16x128xf32> to vector<8x16x128xf32>
    %108 = arith.addf %105, %107 : vector<8x16x128xf32>
    %c0_84 = arith.constant 0 : index
    %c0_85 = arith.constant 0 : index
    %c0_86 = arith.constant 0 : index
    %c0_87 = arith.constant 0 : index
    %109 = vector.load %arg8[%c0_84, %c0_85, %c0_86, %c0_87] : memref<1x8x16x128xf32, #tpu.memory_space<vmem>>, vector<1x8x16x128xf32>
    %110 = vector.shape_cast %109 : vector<1x8x16x128xf32> to vector<8x16x128xf32>
    %111 = vector.shape_cast %108 : vector<8x16x128xf32> to vector<1x8x16x128xf32>
    tpu.vector_store %arg8[%c0_84, %c0_85, %c0_86, %c0_87], %111 {strides = array<i32>} : memref<1x8x16x128xf32, #tpu.memory_space<vmem>>, vector<1x8x16x128xf32>,
    return
  }
  func.func @transform_1(%arg0: i32, %arg1: i32) -> (i32, i32) {
    %c0_i32 = arith.constant 0 : i32
    %c0_i32_0 = arith.constant 0 : i32
    %c0_i32_1 = arith.constant 0 : i32
    return %c0_i32, %c0_i32_0 : i32, i32
  }
  func.func @transform_2(%arg0: i32, %arg1: i32) -> (i32, i32, i32) {
    %c0_i32 = arith.constant 0 : i32
    %c0_i32_0 = arith.constant 0 : i32
    %c0_i32_1 = arith.constant 0 : i32
    %c0_i32_2 = arith.constant 0 : i32
    return %c0_i32, %c0_i32_0, %c0_i32_1 : i32, i32, i32
  }
  func.func @transform_3(%arg0: i32, %arg1: i32) -> (i32, i32) {
    %c0_i32 = arith.constant 0 : i32
    %c0_i32_0 = arith.constant 0 : i32
    %c0_i32_1 = arith.constant 0 : i32
    return %c0_i32, %c0_i32_0 : i32, i32
  }
  func.func @transform_4(%arg0: i32, %arg1: i32) -> (i32, i32) {
    %c0_i32 = arith.constant 0 : i32
    %c0_i32_0 = arith.constant 0 : i32
    %c0_i32_1 = arith.constant 0 : i32
    return %c0_i32, %c0_i32_0 : i32, i32
  }
  func.func @transform_5(%arg0: i32, %arg1: i32) -> (i32, i32) {
    %c0_i32 = arith.constant 0 : i32
    %c0_i32_0 = arith.constant 0 : i32
    %c0_i32_1 = arith.constant 0 : i32
    return %c0_i32, %c0_i32_0 : i32, i32
  }
  func.func @transform_6(%arg0: i32, %arg1: i32) -> (i32, i32, i32, i32) {
    %c0_i32 = arith.constant 0 : i32
    %c0_i32_0 = arith.constant 0 : i32
    %c0_i32_1 = arith.constant 0 : i32
    return %arg0, %arg1, %c0_i32, %c0_i32_0 : i32, i32, i32, i32
  }
}

</mosaic_0001>

<llo_original>
// kernel: tpu_custom_call.1
$region0: #{tpu_custom_call.1}
  #allocation0 [shape = 'u32[]', space=smem, size = 0x4, offset = 0x4, fixed_abs, tag = 'smem constant byte address 0x4 - core index']
  #allocation1 [shape = 'u32[144,128]{1,0:T(1,128)}', space=vmem, size = 0x12000, scoped, tag = 'internal scratch']
  #allocation2 [shape = 'f32[1,10,24,128]{3,2,1,0:T(8,128)}', space=vmem, size = 0x1e000, scoped, tag = 'scratch operand']
  #allocation3 [shape = 'f32[1,10,24,128]{3,2,1,0:T(8,128)}', space=vmem, size = 0x1e000, scoped, tag = 'scratch operand']
  #allocation4 [shape = 's32[1]{0}', space=sflag, size = 0x4, scoped, tag = 'scratch operand']
  #allocation15 [shape = 's32[]', space=sflag, size = 0x4, offset = 0, fixed_abs, tag = 'sflag constant byte address 0x0 - dummy sync flag']
  #allocation16 [shape = 's32[]', space=sflag, size = 0x4, offset = 0, fixed_abs, tag = 'sflag constant byte address 0x0 - dummy sync flag']
  #allocation17 [shape = 'u32[]', space=smem, size = 0x4, offset = 0x44, fixed_abs, tag = 'smem constant byte address 0x44 - assertion arg 0']
  #allocation18 [shape = 'u32[]', space=smem, size = 0x4, offset = 0x48, fixed_abs, tag = 'smem constant byte address 0x48 - assertion arg 1']
  %s0 = inlined_call_operand.hbm [shape: f32[2,1,18,24,128], index: 0, kind: input, shape index: {}]
  %s1 = inlined_call_operand.hbm [shape: f32[128,128], index: 1, kind: input, shape index: {}]
  %s2 = inlined_call_operand.hbm [shape: f32[9,1,128], index: 2, kind: input, shape index: {}]
  %s3 = inlined_call_operand.hbm [shape: f32[1,128], index: 3, kind: input, shape index: {}]
  %s4 = inlined_call_operand.hbm [shape: f32[128,128], index: 4, kind: input, shape index: {}]
  %s5 = inlined_call_operand.hbm [shape: f32[1,128], index: 5, kind: input, shape index: {}]
  %s6 = inlined_call_operand.hbm [shape: f32[2,16,16,128], index: 6, kind: output, shape index: {}]
  %s7 = sld [smem:[#allocation0]]
  $region77: #{tpu_custom_call.1} parent=0
    _
  %s9 = ssub.s32 1, %s7
  %s10 = scalar_select 0, %s9, %s7
  $region1: #{tpu_custom_call.1} parent=0
    #allocation5 [shape = 'u8[65536]{0}', space=vmem, size = 0x10000, scoped, tag = 'input window, operand 1, single buffered']
    #allocation6 [shape = 's32[2]{0}', space=sflag, size = 0x8, scoped, tag = 'scoped memory for tpu_custom_call.1']
    #allocation7 [shape = 's32[2]{0}', space=sflag, size = 0x8, scoped, tag = 'scoped memory for tpu_custom_call.1']
    #allocation8 [shape = 'u8[4608]{0}', space=vmem, size = 0x1400, scoped, tag = 'input window, operand 2, single buffered']
    #allocation9 [shape = 's32[1]{0}', space=sflag, size = 0x4, scoped, tag = 'scoped memory for tpu_custom_call.1']
    #allocation10 [shape = 'u8[512]{0}', space=vmem, size = 0x400, scoped, tag = 'input window, operand 3, single buffered']
    #allocation11 [shape = 'u8[65536]{0}', space=vmem, size = 0x10000, scoped, tag = 'input window, operand 4, single buffered']
    #allocation12 [shape = 's32[1]{0}', space=sflag, size = 0x4, scoped, tag = 'scoped memory for tpu_custom_call.1']
    #allocation13 [shape = 'u8[512]{0}', space=vmem, size = 0x400, scoped, tag = 'input window, operand 5, single buffered']
    #allocation14 [shape = 'u8[131072]{0}', space=vmem, size = 0x20000, scoped, tag = 'output window, operand 0']
    %11 = vsyncpa [#allocation6], 0
    %12 = vsyncpa [#allocation9], 0
    %13 = vsyncpa [#allocation12], 0
    %14 = vsyncpa [#allocation7], 0
    %s15 = scalar_lea.sflag [#allocation7], 1
    %16 = vsyncpa %s15, 0
    loop: start=0, step=1, limit=6
    $region2: #{tpu_custom_call.1} parent=1 // loop_pre_header
      _
    $region3: #{tpu_custom_call.1} parent=1 // loop_header
      %s18 = sphi 0, %s22
      %p19 = scmp.ge.s32.totalorder %s18, 6
      %s25 = sphi 0, %s37
      %s26 = sphi 0, %s33
      %s27 = sphi 0, %s25
      %s28 = sphi 0, %s26
      %s29 = sphi 0, %s27
      %s30 = sphi 0, %s28
      %s38 = sphi 0, %s38
      %s40 = sphi 0, %s38
      %s41 = sphi 0, %s40
      %s55 = sphi 0, %s41
      %s59 = sphi 0, %s59
      %s61 = sphi 0, %s59
      %s62 = sphi 0, %s61
      %s76 = sphi 0, %s62
      %s80 = sphi 0, %s80
      %s82 = sphi 0, %s80
      %s83 = sphi 0, %s82
      %s97 = sphi 0, %s83
      %s101 = sphi 0, %s101
      %s103 = sphi 0, %s101
      %s104 = sphi 0, %s103
      %s118 = sphi 0, %s104
      %s122 = sphi 0, %s122
      %s124 = sphi 0, %s122
      %s125 = sphi 0, %s124
      %s139 = sphi 0, %s125
      %s147 = sphi 0, %s149
      %s150 = sphi 0, %s147
      %s151 = sphi 0, %s150
      %s167 = sphi 0, %s151
    $region4: #{tpu_custom_call.1} parent=1 // loop_header_branch
      %21 = sbr.rel (%p19) target = $region8
    $region5: #{tpu_custom_call.1} parent=1 // loop_body
      %s23 = ssub.s32 %s18, 1
      %s24 = ssub.s32 %s18, 2
      %s31 = sadd.s32 1, %s26
      %p32 = scmp.ge.s32.totalorder %s31, 2
      %s33 = scalar_select %p32, 0, %s31
      %s34 = sadd.s32 1, %s25
      %s35 = scalar_select %p32, %s34, %s25
      %p36 = scmp.ge.s32.totalorder %s35, 2
      %s37 = scalar_select %p36, 0, %s35
      %s39 = sadd.s32 %s38, 1
      %p42 = scmp.eq.s32.totalorder %s18, 3
      %p43 = scmp.ne.s32.totalorder %s38, %s40
      %p44 = scmp.eq.s32.totalorder %s18, 0
      %p45 = por %p43, %p44
      %p46 = scmp.ne.s32.totalorder %s38, %s40
      %p47 = scmp.eq.s32.totalorder %s23, 3
      %p48 = por %p46, %p47
      %p49 = scmp.ne.s32.totalorder %s40, %s41
      %p50 = scmp.eq.s32.totalorder %s23, 0
      %p51 = por %p49, %p50
      %p52 = scmp.ne.s32.totalorder %s40, %s41
      %p53 = scmp.eq.s32.totalorder %s24, 3
      %p54 = por %p52, %p53
      %p56 = scmp.ne.s32.totalorder %s41, %s55
      %p57 = scmp.eq.s32.totalorder %s24, 0
      %p58 = por %p56, %p57
      %s60 = sadd.s32 %s59, 1
      %p63 = scmp.eq.s32.totalorder %s18, 3
      %p64 = scmp.ne.s32.totalorder %s59, %s61
      %p65 = scmp.eq.s32.totalorder %s18, 0
      %p66 = por %p64, %p65
      %p67 = scmp.ne.s32.totalorder %s59, %s61
      %p68 = scmp.eq.s32.totalorder %s23, 3
      %p69 = por %p67, %p68
      %p70 = scmp.ne.s32.totalorder %s61, %s62
      %p71 = scmp.eq.s32.totalorder %s23, 0
      %p72 = por %p70, %p71
      %p73 = scmp.ne.s32.totalorder %s61, %s62
      %p74 = scmp.eq.s32.totalorder %s24, 3
      %p75 = por %p73, %p74
      %p77 = scmp.ne.s32.totalorder %s62, %s76
      %p78 = scmp.eq.s32.totalorder %s24, 0
      %p79 = por %p77, %p78
      %s81 = sadd.s32 %s80, 1
      %p84 = scmp.eq.s32.totalorder %s18, 3
      %p85 = scmp.ne.s32.totalorder %s80, %s82
      %p86 = scmp.eq.s32.totalorder %s18, 0
      %p87 = por %p85, %p86
      %p88 = scmp.ne.s32.totalorder %s80, %s82
      %p89 = scmp.eq.s32.totalorder %s23, 3
      %p90 = por %p88, %p89
      %p91 = scmp.ne.s32.totalorder %s82, %s83
      %p92 = scmp.eq.s32.totalorder %s23, 0
      %p93 = por %p91, %p92
      %p94 = scmp.ne.s32.totalorder %s82, %s83
      %p95 = scmp.eq.s32.totalorder %s24, 3
      %p96 = por %p94, %p95
      %p98 = scmp.ne.s32.totalorder %s83, %s97
      %p99 = scmp.eq.s32.totalorder %s24, 0
      %p100 = por %p98, %p99
      %s102 = sadd.s32 %s101, 1
      %p105 = scmp.eq.s32.totalorder %s18, 3
      %p106 = scmp.ne.s32.totalorder %s101, %s103
      %p107 = scmp.eq.s32.totalorder %s18, 0
      %p108 = por %p106, %p107
      %p109 = scmp.ne.s32.totalorder %s101, %s103
      %p110 = scmp.eq.s32.totalorder %s23, 3
      %p111 = por %p109, %p110
      %p112 = scmp.ne.s32.totalorder %s103, %s104
      %p113 = scmp.eq.s32.totalorder %s23, 0
      %p114 = por %p112, %p113
      %p115 = scmp.ne.s32.totalorder %s103, %s104
      %p116 = scmp.eq.s32.totalorder %s24, 3
      %p117 = por %p115, %p116
      %p119 = scmp.ne.s32.totalorder %s104, %s118
      %p120 = scmp.eq.s32.totalorder %s24, 0
      %p121 = por %p119, %p120
      %s123 = sadd.s32 %s122, 1
      %p126 = scmp.eq.s32.totalorder %s18, 3
      %p127 = scmp.ne.s32.totalorder %s122, %s124
      %p128 = scmp.eq.s32.totalorder %s18, 0
      %p129 = por %p127, %p128
      %p130 = scmp.ne.s32.totalorder %s122, %s124
      %p131 = scmp.eq.s32.totalorder %s23, 3
      %p132 = por %p130, %p131
      %p133 = scmp.ne.s32.totalorder %s124, %s125
      %p134 = scmp.eq.s32.totalorder %s23, 0
      %p135 = por %p133, %p134
      %p136 = scmp.ne.s32.totalorder %s124, %s125
      %p137 = scmp.eq.s32.totalorder %s24, 3
      %p138 = por %p136, %p137
      %p140 = scmp.ne.s32.totalorder %s125, %s139
      %p141 = scmp.eq.s32.totalorder %s24, 0
      %p142 = por %p140, %p141
      %s143 = ssub.s32 %s25, %s37
      %s144 = ssub.s32 %s26, %s33
      %s145 = sor.u32 %s143, %s144
      %p146 = scmp.eq.s32.totalorder %s145, 0
      %s148 = sadd.s32 %s147, 1
      %s149 = scalar_select %p146, %s147, %s148
      %p152 = pneg %p146
      %p153 = scmp.eq.s32.totalorder %s18, 3
      %p154 = por %p152, %p153
      %p155 = scmp.ne.s32.totalorder %s147, %s150
      %p156 = scmp.eq.s32.totalorder %s18, 0
      %p157 = por %p155, %p156
      %p158 = scmp.ne.s32.totalorder %s147, %s150
      %p159 = scmp.eq.s32.totalorder %s23, 3
      %p160 = por %p158, %p159
      %p161 = scmp.ne.s32.totalorder %s150, %s151
      %p162 = scmp.eq.s32.totalorder %s23, 0
      %p163 = por %p161, %p162
      %p164 = scmp.ne.s32.totalorder %s150, %s151
      %p165 = scmp.eq.s32.totalorder %s24, 3
      %p166 = por %p164, %p165
      %p168 = scmp.ne.s32.totalorder %s151, %s167
      %p169 = scmp.eq.s32.totalorder %s24, 0
      %p170 = por %p168, %p169
      %p171 = scmp.le.s32.totalorder 1, %s18
      %p172 = scmp.lt.s32.totalorder %s18, 5
      %p173 = pnand %p171, %p172
      %p174 = pneg %p173
      // Predicated region
      $region9: #{tpu_custom_call.1} parent=5 // pred_check
        _
      $region10: #{tpu_custom_call.1} parent=5 // pred_check_branch
        %176 = sbr.rel (%p173) target = $region12
      $region11: #{tpu_custom_call.1} parent=5 // pred_region
        %s177 = ssub.s32 %s18, 1
        // Predicated region
        $region13: #{tpu_custom_call.1} parent=11 // pred_check
          %p178 = pneg %p51
        $region14: #{tpu_custom_call.1} parent=11 // pred_check_branch
          %180 = sbr.rel (%p178) target = $region16
        $region15: #{tpu_custom_call.1} parent=11 // pred_region
          %s182 = ssub.s32 2048, 2048
          %183 = vsyncadd [#allocation6], %s182
          %s184 = sshll.u32 [#allocation5], 4
          %s185 = int_to_ptr.vmem [resolvable:$true] %s184
          %190 = dma.hbm_to_vmem [thread:$0]  %s1, 2048, %s185, [#allocation6], 128, 128, 8
        $region16: #{tpu_custom_call.1} parent=11 // pred_fallthru
          _
        // Predicated region
        $region17: #{tpu_custom_call.1} parent=11 // pred_check
          %p191 = pneg %p72
        $region18: #{tpu_custom_call.1} parent=11 // pred_check_branch
          %193 = sbr.rel (%p191) target = $region20
        $region19: #{tpu_custom_call.1} parent=11 // pred_region
          %s195 = ssub.s32 144, 144
          %196 = vsyncadd [#allocation9], %s195
          %s197 = sshll.u32 [#allocation8], 4
          %s198 = int_to_ptr.vmem [resolvable:$true] %s197
          %203 = dma.hbm_to_vmem [thread:$0]  %s2, 144, %s198, [#allocation9], 16, 16, 1
        $region20: #{tpu_custom_call.1} parent=11 // pred_fallthru
          _
        // Predicated region
        $region21: #{tpu_custom_call.1} parent=11 // pred_check
          %p204 = pneg %p93
        $region22: #{tpu_custom_call.1} parent=11 // pred_check_branch
          %206 = sbr.rel (%p204) target = $region24
        $region23: #{tpu_custom_call.1} parent=11 // pred_region
          %s208 = ssub.s32 16, 16
          %209 = vsyncadd [#allocation9], %s208
          %s211 = sshll.u32 [#allocation10], 4
          %s212 = int_to_ptr.vmem [resolvable:$true] %s211
          %214 = dma.hbm_to_vmem [thread:$0]  %s3, 16, %s212, [#allocation9]
        $region24: #{tpu_custom_call.1} parent=11 // pred_fallthru
          _
        // Predicated region
        $region25: #{tpu_custom_call.1} parent=11 // pred_check
          %p215 = pneg %p114
        $region26: #{tpu_custom_call.1} parent=11 // pred_check_branch
          %217 = sbr.rel (%p215) target = $region28
        $region27: #{tpu_custom_call.1} parent=11 // pred_region
          %s219 = ssub.s32 2048, 2048
          %220 = vsyncadd [#allocation12], %s219
          %s221 = sshll.u32 [#allocation11], 4
          %s222 = int_to_ptr.vmem [resolvable:$true] %s221
          %227 = dma.hbm_to_vmem [thread:$0]  %s4, 2048, %s222, [#allocation12], 128, 128, 8
        $region28: #{tpu_custom_call.1} parent=11 // pred_fallthru
          _
        // Predicated region
        $region29: #{tpu_custom_call.1} parent=11 // pred_check
          %p228 = pneg %p135
        $region30: #{tpu_custom_call.1} parent=11 // pred_check_branch
          %230 = sbr.rel (%p228) target = $region32
        $region31: #{tpu_custom_call.1} parent=11 // pred_region
          %s232 = ssub.s32 16, 16
          %233 = vsyncadd [#allocation12], %s232
          %s235 = sshll.u32 [#allocation13], 4
          %s236 = int_to_ptr.vmem [resolvable:$true] %s235
          %238 = dma.hbm_to_vmem [thread:$0]  %s5, 16, %s236, [#allocation12]
        $region32: #{tpu_custom_call.1} parent=11 // pred_fallthru
          _
      $region12: #{tpu_custom_call.1} parent=5 // pred_fallthru
        _
      %p239 = scmp.lt.s32.totalorder %s18, 4
      // Predicated region
      $region33: #{tpu_custom_call.1} parent=5 // pred_check
        %p240 = pneg %p239
      $region34: #{tpu_custom_call.1} parent=5 // pred_check_branch
        %242 = sbr.rel (%p240) target = $region36
      $region35: #{tpu_custom_call.1} parent=5 // pred_region
        _
      $region36: #{tpu_custom_call.1} parent=5 // pred_fallthru
        _
      %p243 = scmp.le.s32.totalorder 1, %s18
      %p244 = scmp.lt.s32.totalorder %s18, 5
      %p245 = pnand %p243, %p244
      %p246 = pneg %p245
      // Predicated region
      $region37: #{tpu_custom_call.1} parent=5 // pred_check
        _
      $region38: #{tpu_custom_call.1} parent=5 // pred_check_branch
        %248 = sbr.rel (%p245) target = $region40
      $region39: #{tpu_custom_call.1} parent=5 // pred_region
        %s249 = ssub.s32 %s18, 1
        // Predicated region
        $region41: #{tpu_custom_call.1} parent=39 // pred_check
          %p250 = pneg %p51
        $region42: #{tpu_custom_call.1} parent=39 // pred_check_branch
          %252 = sbr.rel (%p250) target = $region44
        $region43: #{tpu_custom_call.1} parent=39 // pred_region
          %253 = dma.done [#allocation6], 2048
        $region44: #{tpu_custom_call.1} parent=39 // pred_fallthru
          _
        // Predicated region
        $region45: #{tpu_custom_call.1} parent=39 // pred_check
          %p254 = pneg %p72
        $region46: #{tpu_custom_call.1} parent=39 // pred_check_branch
          %256 = sbr.rel (%p254) target = $region48
        $region47: #{tpu_custom_call.1} parent=39 // pred_region
          %257 = dma.done [#allocation9], 144
        $region48: #{tpu_custom_call.1} parent=39 // pred_fallthru
          _
        // Predicated region
        $region49: #{tpu_custom_call.1} parent=39 // pred_check
          %p258 = pneg %p93
        $region50: #{tpu_custom_call.1} parent=39 // pred_check_branch
          %260 = sbr.rel (%p258) target = $region52
        $region51: #{tpu_custom_call.1} parent=39 // pred_region
          %261 = dma.done [#allocation9], 16
        $region52: #{tpu_custom_call.1} parent=39 // pred_fallthru
          _
        // Predicated region
        $region53: #{tpu_custom_call.1} parent=39 // pred_check
          %p262 = pneg %p114
        $region54: #{tpu_custom_call.1} parent=39 // pred_check_branch
          %264 = sbr.rel (%p262) target = $region56
        $region55: #{tpu_custom_call.1} parent=39 // pred_region
          %265 = dma.done [#allocation12], 2048
        $region56: #{tpu_custom_call.1} parent=39 // pred_fallthru
          _
        // Predicated region
        $region57: #{tpu_custom_call.1} parent=39 // pred_check
          %p266 = pneg %p135
        $region58: #{tpu_custom_call.1} parent=39 // pred_check_branch
          %268 = sbr.rel (%p266) target = $region60
        $region59: #{tpu_custom_call.1} parent=39 // pred_region
          %269 = dma.done [#allocation12], 16
        $region60: #{tpu_custom_call.1} parent=39 // pred_fallthru
          _
        %p270 = pneg %p51
        %p271 = pneg %p48
        %p272 = pneg %p72
        %p273 = pneg %p69
        %p274 = pneg %p93
        %p275 = pneg %p90
        %p276 = pneg %p114
        %p277 = pneg %p111
        %p278 = pneg %p135
        %p279 = pneg %p132
        %p280 = pneg %p163
        %p281 = pneg %p160
        %s282 = sand.u32 %s150, 1
        %s283 = scalar_lea.sflag [#allocation7], %s282
        %s284 = sand.u32 %s150, 1
        %s285 = smul.addr %s284, 128
        %s286 = scalar_lea.vmem [#allocation14], %s285
        %s287 = smul.u32 8, %s28
        %s288 = smul.u32 %s28, 8
        %s289 = smul.u32 %s288, 24
        %s290 = smul.u32 %s27, 432
        %s291 = sadd.s32 %s289, %s290
        %s292 = smul.addr %s291, 16
        %s293 = scalar_lea.hbm %s0, %s292
        // Predicated region
        $region61: #{tpu_custom_call.1} parent=39 // pred_check
          _
        $region62: #{tpu_custom_call.1} parent=39 // pred_check_branch
          %295 = sbr.rel target = $region64
        $region63: #{tpu_custom_call.1} parent=39 // pred_region
          %296 = sst [smem:[#allocation17]] [#allocation16]
          %297 = sst [smem:[#allocation18]] [#allocation15]
        $region64: #{tpu_custom_call.1} parent=39 // pred_fallthru
          _
        %299 = shalt.err (0)
        %s301 = sshll.u32 [#allocation2], 4
        %s302 = int_to_ptr.vmem [resolvable:$true] %s301
        %304 = dma.hbm_to_vmem [thread:$0]  %s293, 3840, %s302, [#allocation4]
        %s305 = smul.u32 1, 10
        %s306 = smul.u32 %s305, 24
        %s307 = smul.u32 %s306, 1
        %s308 = sshll.u32 %s307, 4
        %309 = dma.done [#allocation4], %s308
        %v310 = vld [vmem:[#allocation2] sm:$0xff]
        %v311 = vld [vmem:[#allocation2 + $0x8] sm:$0xff]
        %v312 = vld [vmem:[#allocation2 + $0x10] sm:$0xff]
        %v313 = vld [vmem:[#allocation2 + $0x18] sm:$0xff]
        %v314 = vld [vmem:[#allocation2 + $0x20] sm:$0xff]
        %v315 = vld [vmem:[#allocation2 + $0x28] sm:$0xff]
        %v316 = vld [vmem:[#allocation2 + $0x30] sm:$0xff]
        %v317 = vld [vmem:[#allocation2 + $0x38] sm:$0xff]
        %v318 = vld [vmem:[#allocation2 + $0x40] sm:$0xff]
        %v319 = vld [vmem:[#allocation2 + $0x48] sm:$0xff]
        %v320 = vld [vmem:[#allocation2 + $0x50] sm:$0xff]
        %v321 = vld [vmem:[#allocation2 + $0x58] sm:$0xff]
        %v322 = vld [vmem:[#allocation2 + $0x60] sm:$0xff]
        %v323 = vld [vmem:[#allocation2 + $0x68] sm:$0xff]
        %v324 = vld [vmem:[#allocation2 + $0x70] sm:$0xff]
        %v325 = vld [vmem:[#allocation2 + $0x78] sm:$0xff]
        %v326 = vld [vmem:[#allocation2 + $0x80] sm:$0xff]
        %v327 = vld [vmem:[#allocation2 + $0x88] sm:$0xff]
        %v328 = vld [vmem:[#allocation2 + $0x90] sm:$0xff]
        %v329 = vld [vmem:[#allocation2 + $0x98] sm:$0xff]
        %v330 = vld [vmem:[#allocation2 + $0xa0] sm:$0xff]
        %v331 = vld [vmem:[#allocation2 + $0xa8] sm:$0xff]
        %v332 = vld [vmem:[#allocation2 + $0xb0] sm:$0xff]
        %v333 = vld [vmem:[#allocation2 + $0xb8] sm:$0xff]
        %v334 = vld [vmem:[#allocation2 + $0xc0] sm:$0xff]
        %v335 = vld [vmem:[#allocation2 + $0xc8] sm:$0xff]
        %v336 = vld [vmem:[#allocation2 + $0xd0] sm:$0xff]
        %v337 = vld [vmem:[#allocation2 + $0xd8] sm:$0xff]
        %v338 = vld [vmem:[#allocation2 + $0xe0] sm:$0xff]
        %v339 = vld [vmem:[#allocation2 + $0xe8] sm:$0xff]
        %v340 = vld [vmem:[#allocation5] sm:$0xff]
        %v341 = vld [vmem:[#allocation5 + $0x8] sm:$0xff]
        %v342 = vld [vmem:[#allocation5 + $0x10] sm:$0xff]
        %v343 = vld [vmem:[#allocation5 + $0x18] sm:$0xff]
        %v344 = vld [vmem:[#allocation5 + $0x20] sm:$0xff]
        %v345 = vld [vmem:[#allocation5 + $0x28] sm:$0xff]
        %v346 = vld [vmem:[#allocation5 + $0x30] sm:$0xff]
        %v347 = vld [vmem:[#allocation5 + $0x38] sm:$0xff]
        %v348 = vld [vmem:[#allocation5 + $0x40] sm:$0xff]
        %v349 = vld [vmem:[#allocation5 + $0x48] sm:$0xff]
        %v350 = vld [vmem:[#allocation5 + $0x50] sm:$0xff]
        %v351 = vld [vmem:[#allocation5 + $0x58] sm:$0xff]
        %v352 = vld [vmem:[#allocation5 + $0x60] sm:$0xff]
        %v353 = vld [vmem:[#allocation5 + $0x68] sm:$0xff]
        %v354 = vld [vmem:[#allocation5 + $0x70] sm:$0xff]
        %v355 = vld [vmem:[#allocation5 + $0x78] sm:$0xff]
        %356 = vmatprep.subr.mxu0 0.0
        %357 = vmatpush1.msra.mxu0 %v340
        %358 = vmatprep.subr.mxu0 0.0
        %359 = vmatpush1.msra.mxu0 %v341
        %360 = vmatprep.subr.mxu0 0.0
        %361 = vmatpush1.msra.mxu0 %v342
        %362 = vmatprep.subr.mxu0 0.0
        %363 = vmatpush1.msra.mxu0 %v343
        %364 = vmatprep.subr.mxu0 0.0
        %365 = vmatpush1.msra.mxu0 %v344
        %366 = vmatprep.subr.mxu0 0.0
        %367 = vmatpush1.msra.mxu0 %v345
        %368 = vmatprep.subr.mxu0 0.0
        %369 = vmatpush1.msra.mxu0 %v346
        %370 = vmatprep.subr.mxu0 0.0
        %371 = vmatpush1.msra.mxu0 %v347
        %372 = vmatprep.subr.mxu0 0.0
        %373 = vmatpush1.msra.mxu0 %v348
        %374 = vmatprep.subr.mxu0 0.0
        %375 = vmatpush1.msra.mxu0 %v349
        %376 = vmatprep.subr.mxu0 0.0
        %377 = vmatpush1.msra.mxu0 %v350
        %378 = vmatprep.subr.mxu0 0.0
        %379 = vmatpush1.msra.mxu0 %v351
        %380 = vmatprep.subr.mxu0 0.0
        %381 = vmatpush1.msra.mxu0 %v352
        %382 = vmatprep.subr.mxu0 0.0
        %383 = vmatpush1.msra.mxu0 %v353
        %384 = vmatprep.subr.mxu0 0.0
        %385 = vmatpush1.msra.mxu0 %v354
        %386 = vmatprep.subr.mxu0 0.0
        %387 = vmatpush1.msra.mxu0 %v355
        %388 = vmatprep.subr.mxu0 0.0
        %389 = vmatpush1.msra.mxu0 0.0
        %390 = vmatprep.subr.mxu0 0.0
        %391 = vmatpush1.msra.mxu0 0.0
        %392 = vmatprep.subr.mxu0 0.0
        %393 = vmatpush1.msra.mxu0 0.0
        %394 = vmatprep.subr.mxu0 0.0
        %395 = vmatpush1.msra.mxu0 0.0
        %396 = vmatprep.subr.mxu0 0.0
        %397 = vmatpush1.msra.mxu0 0.0
        %398 = vmatprep.subr.mxu0 0.0
        %399 = vmatpush1.msra.mxu0 0.0
        %400 = vmatprep.subr.mxu0 0.0
        %401 = vmatpush1.msra.mxu0 0.0
        %402 = vmatprep.subr.mxu0 0.0
        %403 = vmatpush1.msra.mxu0 0.0
        %404 = vmatprep.subr.mxu0 0.0
        %405 = vmatpush1.msra.mxu0 0.0
        %406 = vmatprep.subr.mxu0 0.0
        %407 = vmatpush1.msra.mxu0 0.0
        %408 = vmatprep.subr.mxu0 0.0
        %409 = vmatpush1.msra.mxu0 0.0
        %410 = vmatprep.subr.mxu0 0.0
        %411 = vmatpush1.msra.mxu0 0.0
        %412 = vmatprep.subr.mxu0 0.0
        %413 = vmatpush1.msra.mxu0 0.0
        %414 = vmatprep.subr.mxu0 0.0
        %415 = vmatpush1.msra.mxu0 0.0
        %416 = vmatprep.subr.mxu0 0.0
        %417 = vmatpush1.msra.mxu0 0.0
        %418 = vmatprep.subr.mxu0 0.0
        %419 = vmatpush1.msra.mxu0 0.0
        %420 = vmatprep.mubr.f32.mxu0 0.0
        %421 = vmatmul.mubr.f32.gmra.mrb[0].mxu0 %v310
        %v422 = vpop.f32.mrb[0].mxu0
        %v423 = vadd.f32 0.0, %v422
        %v424 = vpop.f32.mrb[0].mxu0
        %425 = vmatprep.mubr.f32.mxu0 0.0
        %426 = vmatmul.mubr.f32.gmra.mrb[0].mxu0 %v311
        %v427 = vpop.f32.mrb[0].mxu0
        %v428 = vadd.f32 0.0, %v427
        %v429 = vpop.f32.mrb[0].mxu0
        %430 = vmatprep.mubr.f32.mxu0 0.0
        %431 = vmatmul.mubr.f32.gmra.mrb[0].mxu0 %v312
        %v432 = vpop.f32.mrb[0].mxu0
        %v433 = vadd.f32 0.0, %v432
        %v434 = vpop.f32.mrb[0].mxu0
        %435 = vmatprep.mubr.f32.mxu0 0.0
        %436 = vmatmul.mubr.f32.gmra.mrb[0].mxu0 %v313
        %v437 = vpop.f32.mrb[0].mxu0
        %v438 = vadd.f32 0.0, %v437
        %v439 = vpop.f32.mrb[0].mxu0
        %440 = vmatprep.mubr.f32.mxu0 0.0
        %441 = vmatmul.mubr.f32.gmra.mrb[0].mxu0 %v314
        %v442 = vpop.f32.mrb[0].mxu0
        %v443 = vadd.f32 0.0, %v442
        %v444 = vpop.f32.mrb[0].mxu0
        %445 = vmatprep.mubr.f32.mxu0 0.0
        %446 = vmatmul.mubr.f32.gmra.mrb[0].mxu0 %v315
        %v447 = vpop.f32.mrb[0].mxu0
        %v448 = vadd.f32 0.0, %v447
        %v449 = vpop.f32.mrb[0].mxu0
        %450 = vmatprep.mubr.f32.mxu0 0.0
        %451 = vmatmul.mubr.f32.gmra.mrb[0].mxu0 %v316
        %v452 = vpop.f32.mrb[0].mxu0
        %v453 = vadd.f32 0.0, %v452
        %v454 = vpop.f32.mrb[0].mxu0
        %455 = vmatprep.mubr.f32.mxu0 0.0
        %456 = vmatmul.mubr.f32.gmra.mrb[0].mxu0 %v317
        %v457 = vpop.f32.mrb[0].mxu0
        %v458 = vadd.f32 0.0, %v457
        %v459 = vpop.f32.mrb[0].mxu0
        %460 = vmatprep.mubr.f32.mxu0 0.0
        %461 = vmatmul.mubr.f32.gmra.mrb[0].mxu0 %v318
        %v462 = vpop.f32.mrb[0].mxu0
        %v463 = vadd.f32 0.0, %v462
        %v464 = vpop.f32.mrb[0].mxu0
        %465 = vmatprep.mubr.f32.mxu0 0.0
        %466 = vmatmul.mubr.f32.gmra.mrb[0].mxu0 %v319
        %v467 = vpop.f32.mrb[0].mxu0
        %v468 = vadd.f32 0.0, %v467
        %v469 = vpop.f32.mrb[0].mxu0
        %470 = vmatprep.mubr.f32.mxu0 0.0
        %471 = vmatmul.mubr.f32.gmra.mrb[0].mxu0 %v320
        %v472 = vpop.f32.mrb[0].mxu0
        %v473 = vadd.f32 0.0, %v472
        %v474 = vpop.f32.mrb[0].mxu0
        %475 = vmatprep.mubr.f32.mxu0 0.0
        %476 = vmatmul.mubr.f32.gmra.mrb[0].mxu0 %v321
        %v477 = vpop.f32.mrb[0].mxu0
        %v478 = vadd.f32 0.0, %v477
        %v479 = vpop.f32.mrb[0].mxu0
        %480 = vmatprep.mubr.f32.mxu0 0.0
        %481 = vmatmul.mubr.f32.gmra.mrb[0].mxu0 %v322
        %v482 = vpop.f32.mrb[0].mxu0
        %v483 = vadd.f32 0.0, %v482
        %v484 = vpop.f32.mrb[0].mxu0
        %485 = vmatprep.mubr.f32.mxu0 0.0
        %486 = vmatmul.mubr.f32.gmra.mrb[0].mxu0 %v323
        %v487 = vpop.f32.mrb[0].mxu0
        %v488 = vadd.f32 0.0, %v487
        %v489 = vpop.f32.mrb[0].mxu0
        %490 = vmatprep.mubr.f32.mxu0 0.0
        %491 = vmatmul.mubr.f32.gmra.mrb[0].mxu0 %v324
        %v492 = vpop.f32.mrb[0].mxu0
        %v493 = vadd.f32 0.0, %v492
        %v494 = vpop.f32.mrb[0].mxu0
        %495 = vmatprep.mubr.f32.mxu0 0.0
        %496 = vmatmul.mubr.f32.gmra.mrb[0].mxu0 %v325
        %v497 = vpop.f32.mrb[0].mxu0
        %v498 = vadd.f32 0.0, %v497
        %v499 = vpop.f32.mrb[0].mxu0
        %500 = vmatprep.mubr.f32.mxu0 0.0
        %501 = vmatmul.mubr.f32.gmra.mrb[0].mxu0 %v326
        %v502 = vpop.f32.mrb[0].mxu0
        %v503 = vadd.f32 0.0, %v502
        %v504 = vpop.f32.mrb[0].mxu0
        %505 = vmatprep.mubr.f32.mxu0 0.0
        %506 = vmatmul.mubr.f32.gmra.mrb[0].mxu0 %v327
        %v507 = vpop.f32.mrb[0].mxu0
        %v508 = vadd.f32 0.0, %v507
        %v509 = vpop.f32.mrb[0].mxu0
        %510 = vmatprep.mubr.f32.mxu0 0.0
        %511 = vmatmul.mubr.f32.gmra.mrb[0].mxu0 %v328
        %v512 = vpop.f32.mrb[0].mxu0
        %v513 = vadd.f32 0.0, %v512
        %v514 = vpop.f32.mrb[0].mxu0
        %515 = vmatprep.mubr.f32.mxu0 0.0
        %516 = vmatmul.mubr.f32.gmra.mrb[0].mxu0 %v329
        %v517 = vpop.f32.mrb[0].mxu0
        %v518 = vadd.f32 0.0, %v517
        %v519 = vpop.f32.mrb[0].mxu0
        %520 = vmatprep.mubr.f32.mxu0 0.0
        %521 = vmatmul.mubr.f32.gmra.mrb[0].mxu0 %v330
        %v522 = vpop.f32.mrb[0].mxu0
        %v523 = vadd.f32 0.0, %v522
        %v524 = vpop.f32.mrb[0].mxu0
        %525 = vmatprep.mubr.f32.mxu0 0.0
        %526 = vmatmul.mubr.f32.gmra.mrb[0].mxu0 %v331
        %v527 = vpop.f32.mrb[0].mxu0
        %v528 = vadd.f32 0.0, %v527
        %v529 = vpop.f32.mrb[0].mxu0
        %530 = vmatprep.mubr.f32.mxu0 0.0
        %531 = vmatmul.mubr.f32.gmra.mrb[0].mxu0 %v332
        %v532 = vpop.f32.mrb[0].mxu0
        %v533 = vadd.f32 0.0, %v532
        %v534 = vpop.f32.mrb[0].mxu0
        %535 = vmatprep.mubr.f32.mxu0 0.0
        %536 = vmatmul.mubr.f32.gmra.mrb[0].mxu0 %v333
        %v537 = vpop.f32.mrb[0].mxu0
        %v538 = vadd.f32 0.0, %v537
        %v539 = vpop.f32.mrb[0].mxu0
        %540 = vmatprep.mubr.f32.mxu0 0.0
        %541 = vmatmul.mubr.f32.gmra.mrb[0].mxu0 %v334
        %v542 = vpop.f32.mrb[0].mxu0
        %v543 = vadd.f32 0.0, %v542
        %v544 = vpop.f32.mrb[0].mxu0
        %545 = vmatprep.mubr.f32.mxu0 0.0
        %546 = vmatmul.mubr.f32.gmra.mrb[0].mxu0 %v335
        %v547 = vpop.f32.mrb[0].mxu0
        %v548 = vadd.f32 0.0, %v547
        %v549 = vpop.f32.mrb[0].mxu0
        %550 = vmatprep.mubr.f32.mxu0 0.0
        %551 = vmatmul.mubr.f32.gmra.mrb[0].mxu0 %v336
        %v552 = vpop.f32.mrb[0].mxu0
        %v553 = vadd.f32 0.0, %v552
        %v554 = vpop.f32.mrb[0].mxu0
        %555 = vmatprep.mubr.f32.mxu0 0.0
        %556 = vmatmul.mubr.f32.gmra.mrb[0].mxu0 %v337
        %v557 = vpop.f32.mrb[0].mxu0
        %v558 = vadd.f32 0.0, %v557
        %v559 = vpop.f32.mrb[0].mxu0
        %560 = vmatprep.mubr.f32.mxu0 0.0
        %561 = vmatmul.mubr.f32.gmra.mrb[0].mxu0 %v338
        %v562 = vpop.f32.mrb[0].mxu0
        %v563 = vadd.f32 0.0, %v562
        %v564 = vpop.f32.mrb[0].mxu0
        %565 = vmatprep.mubr.f32.mxu0 0.0
        %566 = vmatmul.mubr.f32.gmra.mrb[0].mxu0 %v339
        %v567 = vpop.f32.mrb[0].mxu0
        %v568 = vadd.f32 0.0, %v567
        %v569 = vpop.f32.mrb[0].mxu0
        %570 = vdwg.mxu0
        %v571 = vsub.f32 0.0, %v423
        %v572 = vsub.f32 0.0, %v428
        %v573 = vsub.f32 0.0, %v433
        %v574 = vsub.f32 0.0, %v438
        %v575 = vsub.f32 0.0, %v443
        %v576 = vsub.f32 0.0, %v448
        %v577 = vsub.f32 0.0, %v453
        %v578 = vsub.f32 0.0, %v458
        %v579 = vsub.f32 0.0, %v463
        %v580 = vsub.f32 0.0, %v468
        %v581 = vsub.f32 0.0, %v473
        %v582 = vsub.f32 0.0, %v478
        %v583 = vsub.f32 0.0, %v483
        %v584 = vsub.f32 0.0, %v488
        %v585 = vsub.f32 0.0, %v493
        %v586 = vsub.f32 0.0, %v498
        %v587 = vsub.f32 0.0, %v503
        %v588 = vsub.f32 0.0, %v508
        %v589 = vsub.f32 0.0, %v513
        %v590 = vsub.f32 0.0, %v518
        %v591 = vsub.f32 0.0, %v523
        %v592 = vsub.f32 0.0, %v528
        %v593 = vsub.f32 0.0, %v533
        %v594 = vsub.f32 0.0, %v538
        %v595 = vsub.f32 0.0, %v543
        %v596 = vsub.f32 0.0, %v548
        %v597 = vsub.f32 0.0, %v553
        %v598 = vsub.f32 0.0, %v558
        %v599 = vsub.f32 0.0, %v563
        %v600 = vsub.f32 0.0, %v568
        %v601 = vmul.f32 %v571, 1.442695
        %v602 = vpow.pop %v601
        %v603 = vmul.f32 %v572, 1.442695
        %v604 = vpow.pop %v603
        %v605 = vmul.f32 %v573, 1.442695
        %v606 = vpow.pop %v605
        %v607 = vmul.f32 %v574, 1.442695
        %v608 = vpow.pop %v607
        %v609 = vmul.f32 %v575, 1.442695
        %v610 = vpow.pop %v609
        %v611 = vmul.f32 %v576, 1.442695
        %v612 = vpow.pop %v611
        %v613 = vmul.f32 %v577, 1.442695
        %v614 = vpow.pop %v613
        %v615 = vmul.f32 %v578, 1.442695
        %v616 = vpow.pop %v615
        %v617 = vmul.f32 %v579, 1.442695
        %v618 = vpow.pop %v617
        %v619 = vmul.f32 %v580, 1.442695
        %v620 = vpow.pop %v619
        %v621 = vmul.f32 %v581, 1.442695
        %v622 = vpow.pop %v621
        %v623 = vmul.f32 %v582, 1.442695
        %v624 = vpow.pop %v623
        %v625 = vmul.f32 %v583, 1.442695
        %v626 = vpow.pop %v625
        %v627 = vmul.f32 %v584, 1.442695
        %v628 = vpow.pop %v627
        %v629 = vmul.f32 %v585, 1.442695
        %v630 = vpow.pop %v629
        %v631 = vmul.f32 %v586, 1.442695
        %v632 = vpow.pop %v631
        %v633 = vmul.f32 %v587, 1.442695
        %v634 = vpow.pop %v633
        %v635 = vmul.f32 %v588, 1.442695
        %v636 = vpow.pop %v635
        %v637 = vmul.f32 %v589, 1.442695
        %v638 = vpow.pop %v637
        %v639 = vmul.f32 %v590, 1.442695
        %v640 = vpow.pop %v639
        %v641 = vmul.f32 %v591, 1.442695
        %v642 = vpow.pop %v641
        %v643 = vmul.f32 %v592, 1.442695
        %v644 = vpow.pop %v643
        %v645 = vmul.f32 %v593, 1.442695
        %v646 = vpow.pop %v645
        %v647 = vmul.f32 %v594, 1.442695
        %v648 = vpow.pop %v647
        %v649 = vmul.f32 %v595, 1.442695
        %v650 = vpow.pop %v649
        %v651 = vmul.f32 %v596, 1.442695
        %v652 = vpow.pop %v651
        %v653 = vmul.f32 %v597, 1.442695
        %v654 = vpow.pop %v653
        %v655 = vmul.f32 %v598, 1.442695
        %v656 = vpow.pop %v655
        %v657 = vmul.f32 %v599, 1.442695
        %v658 = vpow.pop %v657
        %v659 = vmul.f32 %v600, 1.442695
        %v660 = vpow.pop %v659
        %v661 = vadd.f32 %v602, 1.0
        %v662 = vadd.f32 %v604, 1.0
        %v663 = vadd.f32 %v606, 1.0
        %v664 = vadd.f32 %v608, 1.0
        %v665 = vadd.f32 %v610, 1.0
        %v666 = vadd.f32 %v612, 1.0
        %v667 = vadd.f32 %v614, 1.0
        %v668 = vadd.f32 %v616, 1.0
        %v669 = vadd.f32 %v618, 1.0
        %v670 = vadd.f32 %v620, 1.0
        %v671 = vadd.f32 %v622, 1.0
        %v672 = vadd.f32 %v624, 1.0
        %v673 = vadd.f32 %v626, 1.0
        %v674 = vadd.f32 %v628, 1.0
        %v675 = vadd.f32 %v630, 1.0
        %v676 = vadd.f32 %v632, 1.0
        %v677 = vadd.f32 %v634, 1.0
        %v678 = vadd.f32 %v636, 1.0
        %v679 = vadd.f32 %v638, 1.0
        %v680 = vadd.f32 %v640, 1.0
        %v681 = vadd.f32 %v642, 1.0
        %v682 = vadd.f32 %v644, 1.0
        %v683 = vadd.f32 %v646, 1.0
        %v684 = vadd.f32 %v648, 1.0
        %v685 = vadd.f32 %v650, 1.0
        %v686 = vadd.f32 %v652, 1.0
        %v687 = vadd.f32 %v654, 1.0
        %v688 = vadd.f32 %v656, 1.0
        %v689 = vadd.f32 %v658, 1.0
        %v690 = vadd.f32 %v660, 1.0
        %v691 = vrcp.pop %v661
        %v692 = vmul.f32 %v423, %v691
        %v693 = vrcp.pop %v662
        %v694 = vmul.f32 %v428, %v693
        %v695 = vrcp.pop %v663
        %v696 = vmul.f32 %v433, %v695
        %v697 = vrcp.pop %v664
        %v698 = vmul.f32 %v438, %v697
        %v699 = vrcp.pop %v665
        %v700 = vmul.f32 %v443, %v699
        %v701 = vrcp.pop %v666
        %v702 = vmul.f32 %v448, %v701
        %v703 = vrcp.pop %v667
        %v704 = vmul.f32 %v453, %v703
        %v705 = vrcp.pop %v668
        %v706 = vmul.f32 %v458, %v705
        %v707 = vrcp.pop %v669
        %v708 = vmul.f32 %v463, %v707
        %v709 = vrcp.pop %v670
        %v710 = vmul.f32 %v468, %v709
        %v711 = vrcp.pop %v671
        %v712 = vmul.f32 %v473, %v711
        %v713 = vrcp.pop %v672
        %v714 = vmul.f32 %v478, %v713
        %v715 = vrcp.pop %v673
        %v716 = vmul.f32 %v483, %v715
        %v717 = vrcp.pop %v674
        %v718 = vmul.f32 %v488, %v717
        %v719 = vrcp.pop %v675
        %v720 = vmul.f32 %v493, %v719
        %v721 = vrcp.pop %v676
        %v722 = vmul.f32 %v498, %v721
        %v723 = vrcp.pop %v677
        %v724 = vmul.f32 %v503, %v723
        %v725 = vrcp.pop %v678
        %v726 = vmul.f32 %v508, %v725
        %v727 = vrcp.pop %v679
        %v728 = vmul.f32 %v513, %v727
        %v729 = vrcp.pop %v680
        %v730 = vmul.f32 %v518, %v729
        %v731 = vrcp.pop %v681
        %v732 = vmul.f32 %v523, %v731
        %v733 = vrcp.pop %v682
        %v734 = vmul.f32 %v528, %v733
        %v735 = vrcp.pop %v683
        %v736 = vmul.f32 %v533, %v735
        %v737 = vrcp.pop %v684
        %v738 = vmul.f32 %v538, %v737
        %v739 = vrcp.pop %v685
        %v740 = vmul.f32 %v543, %v739
        %v741 = vrcp.pop %v686
        %v742 = vmul.f32 %v548, %v741
        %v743 = vrcp.pop %v687
        %v744 = vmul.f32 %v553, %v743
        %v745 = vrcp.pop %v688
        %v746 = vmul.f32 %v558, %v745
        %v747 = vrcp.pop %v689
        %v748 = vmul.f32 %v563, %v747
        %v749 = vrcp.pop %v690
        %v750 = vmul.f32 %v568, %v749
        %751 = vst [vmem:[#allocation3] sm:$0xff] %v692
        %752 = vst [vmem:[#allocation3 + $0x8] sm:$0xff] %v694
        %753 = vst [vmem:[#allocation3 + $0x10] sm:$0xff] %v696
        %754 = vst [vmem:[#allocation3 + $0x18] sm:$0xff] %v698
        %755 = vst [vmem:[#allocation3 + $0x20] sm:$0xff] %v700
        %756 = vst [vmem:[#allocation3 + $0x28] sm:$0xff] %v702
        %757 = vst [vmem:[#allocation3 + $0x30] sm:$0xff] %v704
        %758 = vst [vmem:[#allocation3 + $0x38] sm:$0xff] %v706
        %759 = vst [vmem:[#allocation3 + $0x40] sm:$0xff] %v708
        %760 = vst [vmem:[#allocation3 + $0x48] sm:$0xff] %v710
        %761 = vst [vmem:[#allocation3 + $0x50] sm:$0xff] %v712
        %762 = vst [vmem:[#allocation3 + $0x58] sm:$0xff] %v714
        %763 = vst [vmem:[#allocation3 + $0x60] sm:$0xff] %v716
        %764 = vst [vmem:[#allocation3 + $0x68] sm:$0xff] %v718
        %765 = vst [vmem:[#allocation3 + $0x70] sm:$0xff] %v720
        %766 = vst [vmem:[#allocation3 + $0x78] sm:$0xff] %v722
        %767 = vst [vmem:[#allocation3 + $0x80] sm:$0xff] %v724
        %768 = vst [vmem:[#allocation3 + $0x88] sm:$0xff] %v726
        %769 = vst [vmem:[#allocation3 + $0x90] sm:$0xff] %v728
        %770 = vst [vmem:[#allocation3 + $0x98] sm:$0xff] %v730
        %771 = vst [vmem:[#allocation3 + $0xa0] sm:$0xff] %v732
        %772 = vst [vmem:[#allocation3 + $0xa8] sm:$0xff] %v734
        %773 = vst [vmem:[#allocation3 + $0xb0] sm:$0xff] %v736
        %774 = vst [vmem:[#allocation3 + $0xb8] sm:$0xff] %v738
        %775 = vst [vmem:[#allocation3 + $0xc0] sm:$0xff] %v740
        %776 = vst [vmem:[#allocation3 + $0xc8] sm:$0xff] %v742
        %777 = vst [vmem:[#allocation3 + $0xd0] sm:$0xff] %v744
        %778 = vst [vmem:[#allocation3 + $0xd8] sm:$0xff] %v746
        %779 = vst [vmem:[#allocation3 + $0xe0] sm:$0xff] %v748
        %780 = vst [vmem:[#allocation3 + $0xe8] sm:$0xff] %v750
        %v781 = vld [vmem:[#allocation3] sm:$0xff]
        %v782 = vld [vmem:[#allocation3 + $0x8] sm:$0xff]
        %v783 = vld [vmem:[#allocation3 + $0x18] sm:$0xff]
        %v784 = vld [vmem:[#allocation3 + $0x20] sm:$0xff]
        %v785 = vld [vmem:[#allocation3 + $0x30] sm:$0xff]
        %v786 = vld [vmem:[#allocation3 + $0x38] sm:$0xff]
        %v787 = vld [vmem:[#allocation3 + $0x48] sm:$0xff]
        %v788 = vld [vmem:[#allocation3 + $0x50] sm:$0xff]
        %v789 = vld [vmem:[#allocation3 + $0x60] sm:$0xff]
        %v790 = vld [vmem:[#allocation3 + $0x68] sm:$0xff]
        %v791 = vld [vmem:[#allocation3 + $0x78] sm:$0xff]
        %v792 = vld [vmem:[#allocation3 + $0x80] sm:$0xff]
        %v793 = vld [vmem:[#allocation3 + $0x90] sm:$0xff]
        %v794 = vld [vmem:[#allocation3 + $0x98] sm:$0xff]
        %v795 = vld [vmem:[#allocation3 + $0xa8] sm:$0xff]
        %v796 = vld [vmem:[#allocation3 + $0xb0] sm:$0xff]
        %v797 = vld [vmem:[#allocation8] sm:$0x1]
        %v799 = vlaneseq
        %v800 = vshrl.u32 %v799, 7
        %v801 = vsub.s32 0, %v800
        %v802 = vrot.slane %v797, %v801
        %v804 = vmul.f32 %v781, %v802
        %v805 = vmul.f32 %v782, %v802
        %v806 = vmul.f32 %v783, %v802
        %v807 = vmul.f32 %v784, %v802
        %v808 = vmul.f32 %v785, %v802
        %v809 = vmul.f32 %v786, %v802
        %v810 = vmul.f32 %v787, %v802
        %v811 = vmul.f32 %v788, %v802
        %v812 = vmul.f32 %v789, %v802
        %v813 = vmul.f32 %v790, %v802
        %v814 = vmul.f32 %v791, %v802
        %v815 = vmul.f32 %v792, %v802
        %v816 = vmul.f32 %v793, %v802
        %v817 = vmul.f32 %v794, %v802
        %v818 = vmul.f32 %v795, %v802
        %v819 = vmul.f32 %v796, %v802
        %v820 = vld [vmem:[#allocation3 + $0x1] sm:$0xff]
        %v821 = vld [vmem:[#allocation3 + $0x9] sm:$0xff]
        %v822 = vld [vmem:[#allocation3 + $0x19] sm:$0xff]
        %v823 = vld [vmem:[#allocation3 + $0x21] sm:$0xff]
        %v824 = vld [vmem:[#allocation3 + $0x31] sm:$0xff]
        %v825 = vld [vmem:[#allocation3 + $0x39] sm:$0xff]
        %v826 = vld [vmem:[#allocation3 + $0x49] sm:$0xff]
        %v827 = vld [vmem:[#allocation3 + $0x51] sm:$0xff]
        %v828 = vld [vmem:[#allocation3 + $0x61] sm:$0xff]
        %v829 = vld [vmem:[#allocation3 + $0x69] sm:$0xff]
        %v830 = vld [vmem:[#allocation3 + $0x79] sm:$0xff]
        %v831 = vld [vmem:[#allocation3 + $0x81] sm:$0xff]
        %v832 = vld [vmem:[#allocation3 + $0x91] sm:$0xff]
        %v833 = vld [vmem:[#allocation3 + $0x99] sm:$0xff]
        %v834 = vld [vmem:[#allocation3 + $0xa9] sm:$0xff]
        %v835 = vld [vmem:[#allocation3 + $0xb1] sm:$0xff]
        %s836 = scalar_lea.vmem [#allocation8], 1
        %v837 = vld [vmem:[%s836] sm:$0x1]
        %v839 = vlaneseq
        %v840 = vshrl.u32 %v839, 7
        %v841 = vsub.s32 0, %v840
        %v842 = vrot.slane %v837, %v841
        %v844 = vmul.f32 %v820, %v842
        %v845 = vmul.f32 %v821, %v842
        %v846 = vmul.f32 %v822, %v842
        %v847 = vmul.f32 %v823, %v842
        %v848 = vmul.f32 %v824, %v842
        %v849 = vmul.f32 %v825, %v842
        %v850 = vmul.f32 %v826, %v842
        %v851 = vmul.f32 %v827, %v842
        %v852 = vmul.f32 %v828, %v842
        %v853 = vmul.f32 %v829, %v842
        %v854 = vmul.f32 %v830, %v842
        %v855 = vmul.f32 %v831, %v842
        %v856 = vmul.f32 %v832, %v842
        %v857 = vmul.f32 %v833, %v842
        %v858 = vmul.f32 %v834, %v842
        %v859 = vmul.f32 %v835, %v842
        %v860 = vld [vmem:[#allocation3 + $0x2] sm:$0xff]
        %v861 = vld [vmem:[#allocation3 + $0xa] sm:$0xff]
        %v862 = vld [vmem:[#allocation3 + $0x1a] sm:$0xff]
        %v863 = vld [vmem:[#allocation3 + $0x22] sm:$0xff]
        %v864 = vld [vmem:[#allocation3 + $0x32] sm:$0xff]
        %v865 = vld [vmem:[#allocation3 + $0x3a] sm:$0xff]
        %v866 = vld [vmem:[#allocation3 + $0x4a] sm:$0xff]
        %v867 = vld [vmem:[#allocation3 + $0x52] sm:$0xff]
        %v868 = vld [vmem:[#allocation3 + $0x62] sm:$0xff]
        %v869 = vld [vmem:[#allocation3 + $0x6a] sm:$0xff]
        %v870 = vld [vmem:[#allocation3 + $0x7a] sm:$0xff]
        %v871 = vld [vmem:[#allocation3 + $0x82] sm:$0xff]
        %v872 = vld [vmem:[#allocation3 + $0x92] sm:$0xff]
        %v873 = vld [vmem:[#allocation3 + $0x9a] sm:$0xff]
        %v874 = vld [vmem:[#allocation3 + $0xaa] sm:$0xff]
        %v875 = vld [vmem:[#allocation3 + $0xb2] sm:$0xff]
        %s876 = scalar_lea.vmem [#allocation8], 2
        %v877 = vld [vmem:[%s876] sm:$0x1]
        %v879 = vlaneseq
        %v880 = vshrl.u32 %v879, 7
        %v881 = vsub.s32 0, %v880
        %v882 = vrot.slane %v877, %v881
        %v884 = vmul.f32 %v860, %v882
        %v885 = vmul.f32 %v861, %v882
        %v886 = vmul.f32 %v862, %v882
        %v887 = vmul.f32 %v863, %v882
        %v888 = vmul.f32 %v864, %v882
        %v889 = vmul.f32 %v865, %v882
        %v890 = vmul.f32 %v866, %v882
        %v891 = vmul.f32 %v867, %v882
        %v892 = vmul.f32 %v868, %v882
        %v893 = vmul.f32 %v869, %v882
        %v894 = vmul.f32 %v870, %v882
        %v895 = vmul.f32 %v871, %v882
        %v896 = vmul.f32 %v872, %v882
        %v897 = vmul.f32 %v873, %v882
        %v898 = vmul.f32 %v874, %v882
        %v899 = vmul.f32 %v875, %v882
        %s900 = scalar_lea.vmem [#allocation3], 24
        %v901 = vld [vmem:[%s900] sm:$0xff]
        %v902 = vld [vmem:[%s900 + $0x8] sm:$0xff]
        %v903 = vld [vmem:[%s900 + $0x18] sm:$0xff]
        %v904 = vld [vmem:[%s900 + $0x20] sm:$0xff]
        %v905 = vld [vmem:[%s900 + $0x30] sm:$0xff]
        %v906 = vld [vmem:[%s900 + $0x38] sm:$0xff]
        %v907 = vld [vmem:[%s900 + $0x48] sm:$0xff]
        %v908 = vld [vmem:[%s900 + $0x50] sm:$0xff]
        %v909 = vld [vmem:[%s900 + $0x60] sm:$0xff]
        %v910 = vld [vmem:[%s900 + $0x68] sm:$0xff]
        %v911 = vld [vmem:[%s900 + $0x78] sm:$0xff]
        %v912 = vld [vmem:[%s900 + $0x80] sm:$0xff]
        %v913 = vld [vmem:[%s900 + $0x90] sm:$0xff]
        %v914 = vld [vmem:[%s900 + $0x98] sm:$0xff]
        %v915 = vld [vmem:[%s900 + $0xa8] sm:$0xff]
        %v916 = vld [vmem:[%s900 + $0xb0] sm:$0xff]
        %s917 = scalar_lea.vmem [#allocation8], 3
        %v918 = vld [vmem:[%s917] sm:$0x1]
        %v920 = vlaneseq
        %v921 = vshrl.u32 %v920, 7
        %v922 = vsub.s32 0, %v921
        %v923 = vrot.slane %v918, %v922
        %v925 = vmul.f32 %v901, %v923
        %v926 = vmul.f32 %v902, %v923
        %v927 = vmul.f32 %v903, %v923
        %v928 = vmul.f32 %v904, %v923
        %v929 = vmul.f32 %v905, %v923
        %v930 = vmul.f32 %v906, %v923
        %v931 = vmul.f32 %v907, %v923
        %v932 = vmul.f32 %v908, %v923
        %v933 = vmul.f32 %v909, %v923
        %v934 = vmul.f32 %v910, %v923
        %v935 = vmul.f32 %v911, %v923
        %v936 = vmul.f32 %v912, %v923
        %v937 = vmul.f32 %v913, %v923
        %v938 = vmul.f32 %v914, %v923
        %v939 = vmul.f32 %v915, %v923
        %v940 = vmul.f32 %v916, %v923
        %v941 = vld [vmem:[%s900 + $0x1] sm:$0xff]
        %v942 = vld [vmem:[%s900 + $0x9] sm:$0xff]
        %v943 = vld [vmem:[%s900 + $0x19] sm:$0xff]
        %v944 = vld [vmem:[%s900 + $0x21] sm:$0xff]
        %v945 = vld [vmem:[%s900 + $0x31] sm:$0xff]
        %v946 = vld [vmem:[%s900 + $0x39] sm:$0xff]
        %v947 = vld [vmem:[%s900 + $0x49] sm:$0xff]
        %v948 = vld [vmem:[%s900 + $0x51] sm:$0xff]
        %v949 = vld [vmem:[%s900 + $0x61] sm:$0xff]
        %v950 = vld [vmem:[%s900 + $0x69] sm:$0xff]
        %v951 = vld [vmem:[%s900 + $0x79] sm:$0xff]
        %v952 = vld [vmem:[%s900 + $0x81] sm:$0xff]
        %v953 = vld [vmem:[%s900 + $0x91] sm:$0xff]
        %v954 = vld [vmem:[%s900 + $0x99] sm:$0xff]
        %v955 = vld [vmem:[%s900 + $0xa9] sm:$0xff]
        %v956 = vld [vmem:[%s900 + $0xb1] sm:$0xff]
        %s957 = scalar_lea.vmem [#allocation8], 4
        %v958 = vld [vmem:[%s957] sm:$0x1]
        %v960 = vlaneseq
        %v961 = vshrl.u32 %v960, 7
        %v962 = vsub.s32 0, %v961
        %v963 = vrot.slane %v958, %v962
        %v965 = vmul.f32 %v941, %v963
        %v966 = vmul.f32 %v942, %v963
        %v967 = vmul.f32 %v943, %v963
        %v968 = vmul.f32 %v944, %v963
        %v969 = vmul.f32 %v945, %v963
        %v970 = vmul.f32 %v946, %v963
        %v971 = vmul.f32 %v947, %v963
        %v972 = vmul.f32 %v948, %v963
        %v973 = vmul.f32 %v949, %v963
        %v974 = vmul.f32 %v950, %v963
        %v975 = vmul.f32 %v951, %v963
        %v976 = vmul.f32 %v952, %v963
        %v977 = vmul.f32 %v953, %v963
        %v978 = vmul.f32 %v954, %v963
        %v979 = vmul.f32 %v955, %v963
        %v980 = vmul.f32 %v956, %v963
        %v981 = vld [vmem:[%s900 + $0x2] sm:$0xff]
        %v982 = vld [vmem:[%s900 + $0xa] sm:$0xff]
        %v983 = vld [vmem:[%s900 + $0x1a] sm:$0xff]
        %v984 = vld [vmem:[%s900 + $0x22] sm:$0xff]
        %v985 = vld [vmem:[%s900 + $0x32] sm:$0xff]
        %v986 = vld [vmem:[%s900 + $0x3a] sm:$0xff]
        %v987 = vld [vmem:[%s900 + $0x4a] sm:$0xff]
        %v988 = vld [vmem:[%s900 + $0x52] sm:$0xff]
        %v989 = vld [vmem:[%s900 + $0x62] sm:$0xff]
        %v990 = vld [vmem:[%s900 + $0x6a] sm:$0xff]
        %v991 = vld [vmem:[%s900 + $0x7a] sm:$0xff]
        %v992 = vld [vmem:[%s900 + $0x82] sm:$0xff]
        %v993 = vld [vmem:[%s900 + $0x92] sm:$0xff]
        %v994 = vld [vmem:[%s900 + $0x9a] sm:$0xff]
        %v995 = vld [vmem:[%s900 + $0xaa] sm:$0xff]
        %v996 = vld [vmem:[%s900 + $0xb2] sm:$0xff]
        %s997 = scalar_lea.vmem [#allocation8], 5
        %v998 = vld [vmem:[%s997] sm:$0x1]
        %v1000 = vlaneseq
        %v1001 = vshrl.u32 %v1000, 7
        %v1002 = vsub.s32 0, %v1001
        %v1003 = vrot.slane %v998, %v1002
        %v1005 = vmul.f32 %v981, %v1003
        %v1006 = vmul.f32 %v982, %v1003
        %v1007 = vmul.f32 %v983, %v1003
        %v1008 = vmul.f32 %v984, %v1003
        %v1009 = vmul.f32 %v985, %v1003
        %v1010 = vmul.f32 %v986, %v1003
        %v1011 = vmul.f32 %v987, %v1003
        %v1012 = vmul.f32 %v988, %v1003
        %v1013 = vmul.f32 %v989, %v1003
        %v1014 = vmul.f32 %v990, %v1003
        %v1015 = vmul.f32 %v991, %v1003
        %v1016 = vmul.f32 %v992, %v1003
        %v1017 = vmul.f32 %v993, %v1003
        %v1018 = vmul.f32 %v994, %v1003
        %v1019 = vmul.f32 %v995, %v1003
        %v1020 = vmul.f32 %v996, %v1003
        %s1021 = scalar_lea.vmem [#allocation3], 48
        %v1022 = vld [vmem:[%s1021] sm:$0xff]
        %v1023 = vld [vmem:[%s1021 + $0x8] sm:$0xff]
        %v1024 = vld [vmem:[%s1021 + $0x18] sm:$0xff]
        %v1025 = vld [vmem:[%s1021 + $0x20] sm:$0xff]
        %v1026 = vld [vmem:[%s1021 + $0x30] sm:$0xff]
        %v1027 = vld [vmem:[%s1021 + $0x38] sm:$0xff]
        %v1028 = vld [vmem:[%s1021 + $0x48] sm:$0xff]
        %v1029 = vld [vmem:[%s1021 + $0x50] sm:$0xff]
        %v1030 = vld [vmem:[%s1021 + $0x60] sm:$0xff]
        %v1031 = vld [vmem:[%s1021 + $0x68] sm:$0xff]
        %v1032 = vld [vmem:[%s1021 + $0x78] sm:$0xff]
        %v1033 = vld [vmem:[%s1021 + $0x80] sm:$0xff]
        %v1034 = vld [vmem:[%s1021 + $0x90] sm:$0xff]
        %v1035 = vld [vmem:[%s1021 + $0x98] sm:$0xff]
        %v1036 = vld [vmem:[%s1021 + $0xa8] sm:$0xff]
        %v1037 = vld [vmem:[%s1021 + $0xb0] sm:$0xff]
        %s1038 = scalar_lea.vmem [#allocation8], 6
        %v1039 = vld [vmem:[%s1038] sm:$0x1]
        %v1041 = vlaneseq
        %v1042 = vshrl.u32 %v1041, 7
        %v1043 = vsub.s32 0, %v1042
        %v1044 = vrot.slane %v1039, %v1043
        %v1046 = vmul.f32 %v1022, %v1044
        %v1047 = vmul.f32 %v1023, %v1044
        %v1048 = vmul.f32 %v1024, %v1044
        %v1049 = vmul.f32 %v1025, %v1044
        %v1050 = vmul.f32 %v1026, %v1044
        %v1051 = vmul.f32 %v1027, %v1044
        %v1052 = vmul.f32 %v1028, %v1044
        %v1053 = vmul.f32 %v1029, %v1044
        %v1054 = vmul.f32 %v1030, %v1044
        %v1055 = vmul.f32 %v1031, %v1044
        %v1056 = vmul.f32 %v1032, %v1044
        %v1057 = vmul.f32 %v1033, %v1044
        %v1058 = vmul.f32 %v1034, %v1044
        %v1059 = vmul.f32 %v1035, %v1044
        %v1060 = vmul.f32 %v1036, %v1044
        %v1061 = vmul.f32 %v1037, %v1044
        %v1062 = vld [vmem:[%s1021 + $0x1] sm:$0xff]
        %v1063 = vld [vmem:[%s1021 + $0x9] sm:$0xff]
        %v1064 = vld [vmem:[%s1021 + $0x19] sm:$0xff]
        %v1065 = vld [vmem:[%s1021 + $0x21] sm:$0xff]
        %v1066 = vld [vmem:[%s1021 + $0x31] sm:$0xff]
        %v1067 = vld [vmem:[%s1021 + $0x39] sm:$0xff]
        %v1068 = vld [vmem:[%s1021 + $0x49] sm:$0xff]
        %v1069 = vld [vmem:[%s1021 + $0x51] sm:$0xff]
        %v1070 = vld [vmem:[%s1021 + $0x61] sm:$0xff]
        %v1071 = vld [vmem:[%s1021 + $0x69] sm:$0xff]
        %v1072 = vld [vmem:[%s1021 + $0x79] sm:$0xff]
        %v1073 = vld [vmem:[%s1021 + $0x81] sm:$0xff]
        %v1074 = vld [vmem:[%s1021 + $0x91] sm:$0xff]
        %v1075 = vld [vmem:[%s1021 + $0x99] sm:$0xff]
        %v1076 = vld [vmem:[%s1021 + $0xa9] sm:$0xff]
        %v1077 = vld [vmem:[%s1021 + $0xb1] sm:$0xff]
        %s1078 = scalar_lea.vmem [#allocation8], 7
        %v1079 = vld [vmem:[%s1078] sm:$0x1]
        %v1081 = vlaneseq
        %v1082 = vshrl.u32 %v1081, 7
        %v1083 = vsub.s32 0, %v1082
        %v1084 = vrot.slane %v1079, %v1083
        %v1086 = vmul.f32 %v1062, %v1084
        %v1087 = vmul.f32 %v1063, %v1084
        %v1088 = vmul.f32 %v1064, %v1084
        %v1089 = vmul.f32 %v1065, %v1084
        %v1090 = vmul.f32 %v1066, %v1084
        %v1091 = vmul.f32 %v1067, %v1084
        %v1092 = vmul.f32 %v1068, %v1084
        %v1093 = vmul.f32 %v1069, %v1084
        %v1094 = vmul.f32 %v1070, %v1084
        %v1095 = vmul.f32 %v1071, %v1084
        %v1096 = vmul.f32 %v1072, %v1084
        %v1097 = vmul.f32 %v1073, %v1084
        %v1098 = vmul.f32 %v1074, %v1084
        %v1099 = vmul.f32 %v1075, %v1084
        %v1100 = vmul.f32 %v1076, %v1084
        %v1101 = vmul.f32 %v1077, %v1084
        %v1102 = vld [vmem:[%s1021 + $0x2] sm:$0xff]
        %v1103 = vld [vmem:[%s1021 + $0xa] sm:$0xff]
        %v1104 = vld [vmem:[%s1021 + $0x1a] sm:$0xff]
        %v1105 = vld [vmem:[%s1021 + $0x22] sm:$0xff]
        %v1106 = vld [vmem:[%s1021 + $0x32] sm:$0xff]
        %v1107 = vld [vmem:[%s1021 + $0x3a] sm:$0xff]
        %v1108 = vld [vmem:[%s1021 + $0x4a] sm:$0xff]
        %v1109 = vld [vmem:[%s1021 + $0x52] sm:$0xff]
        %v1110 = vld [vmem:[%s1021 + $0x62] sm:$0xff]
        %v1111 = vld [vmem:[%s1021 + $0x6a] sm:$0xff]
        %v1112 = vld [vmem:[%s1021 + $0x7a] sm:$0xff]
        %v1113 = vld [vmem:[%s1021 + $0x82] sm:$0xff]
        %v1114 = vld [vmem:[%s1021 + $0x92] sm:$0xff]
        %v1115 = vld [vmem:[%s1021 + $0x9a] sm:$0xff]
        %v1116 = vld [vmem:[%s1021 + $0xaa] sm:$0xff]
        %v1117 = vld [vmem:[%s1021 + $0xb2] sm:$0xff]
        %s1118 = scalar_lea.vmem [#allocation8], 8
        %v1119 = vld [vmem:[%s1118] sm:$0x1]
        %v1121 = vlaneseq
        %v1122 = vshrl.u32 %v1121, 7
        %v1123 = vsub.s32 0, %v1122
        %v1124 = vrot.slane %v1119, %v1123
        %v1126 = vmul.f32 %v1102, %v1124
        %v1127 = vmul.f32 %v1103, %v1124
        %v1128 = vmul.f32 %v1104, %v1124
        %v1129 = vmul.f32 %v1105, %v1124
        %v1130 = vmul.f32 %v1106, %v1124
        %v1131 = vmul.f32 %v1107, %v1124
        %v1132 = vmul.f32 %v1108, %v1124
        %v1133 = vmul.f32 %v1109, %v1124
        %v1134 = vmul.f32 %v1110, %v1124
        %v1135 = vmul.f32 %v1111, %v1124
        %v1136 = vmul.f32 %v1112, %v1124
        %v1137 = vmul.f32 %v1113, %v1124
        %v1138 = vmul.f32 %v1114, %v1124
        %v1139 = vmul.f32 %v1115, %v1124
        %v1140 = vmul.f32 %v1116, %v1124
        %v1141 = vmul.f32 %v1117, %v1124
        %v1142 = vadd.f32 %v804, %v844
        %v1143 = vadd.f32 %v805, %v845
        %v1144 = vadd.f32 %v806, %v846
        %v1145 = vadd.f32 %v807, %v847
        %v1146 = vadd.f32 %v808, %v848
        %v1147 = vadd.f32 %v809, %v849
        %v1148 = vadd.f32 %v810, %v850
        %v1149 = vadd.f32 %v811, %v851
        %v1150 = vadd.f32 %v812, %v852
        %v1151 = vadd.f32 %v813, %v853
        %v1152 = vadd.f32 %v814, %v854
        %v1153 = vadd.f32 %v815, %v855
        %v1154 = vadd.f32 %v816, %v856
        %v1155 = vadd.f32 %v817, %v857
        %v1156 = vadd.f32 %v818, %v858
        %v1157 = vadd.f32 %v819, %v859
        %v1158 = vadd.f32 %v884, %v925
        %v1159 = vadd.f32 %v885, %v926
        %v1160 = vadd.f32 %v886, %v927
        %v1161 = vadd.f32 %v887, %v928
        %v1162 = vadd.f32 %v888, %v929
        %v1163 = vadd.f32 %v889, %v930
        %v1164 = vadd.f32 %v890, %v931
        %v1165 = vadd.f32 %v891, %v932
        %v1166 = vadd.f32 %v892, %v933
        %v1167 = vadd.f32 %v893, %v934
        %v1168 = vadd.f32 %v894, %v935
        %v1169 = vadd.f32 %v895, %v936
        %v1170 = vadd.f32 %v896, %v937
        %v1171 = vadd.f32 %v897, %v938
        %v1172 = vadd.f32 %v898, %v939
        %v1173 = vadd.f32 %v899, %v940
        %v1174 = vadd.f32 %v965, %v1005
        %v1175 = vadd.f32 %v966, %v1006
        %v1176 = vadd.f32 %v967, %v1007
        %v1177 = vadd.f32 %v968, %v1008
        %v1178 = vadd.f32 %v969, %v1009
        %v1179 = vadd.f32 %v970, %v1010
        %v1180 = vadd.f32 %v971, %v1011
        %v1181 = vadd.f32 %v972, %v1012
        %v1182 = vadd.f32 %v973, %v1013
        %v1183 = vadd.f32 %v974, %v1014
        %v1184 = vadd.f32 %v975, %v1015
        %v1185 = vadd.f32 %v976, %v1016
        %v1186 = vadd.f32 %v977, %v1017
        %v1187 = vadd.f32 %v978, %v1018
        %v1188 = vadd.f32 %v979, %v1019
        %v1189 = vadd.f32 %v980, %v1020
        %v1190 = vadd.f32 %v1046, %v1086
        %v1191 = vadd.f32 %v1047, %v1087
        %v1192 = vadd.f32 %v1048, %v1088
        %v1193 = vadd.f32 %v1049, %v1089
        %v1194 = vadd.f32 %v1050, %v1090
        %v1195 = vadd.f32 %v1051, %v1091
        %v1196 = vadd.f32 %v1052, %v1092
        %v1197 = vadd.f32 %v1053, %v1093
        %v1198 = vadd.f32 %v1054, %v1094
        %v1199 = vadd.f32 %v1055, %v1095
        %v1200 = vadd.f32 %v1056, %v1096
        %v1201 = vadd.f32 %v1057, %v1097
        %v1202 = vadd.f32 %v1058, %v1098
        %v1203 = vadd.f32 %v1059, %v1099
        %v1204 = vadd.f32 %v1060, %v1100
        %v1205 = vadd.f32 %v1061, %v1101
        %v1206 = vadd.f32 %v1142, %v1158
        %v1207 = vadd.f32 %v1143, %v1159
        %v1208 = vadd.f32 %v1144, %v1160
        %v1209 = vadd.f32 %v1145, %v1161
        %v1210 = vadd.f32 %v1146, %v1162
        %v1211 = vadd.f32 %v1147, %v1163
        %v1212 = vadd.f32 %v1148, %v1164
        %v1213 = vadd.f32 %v1149, %v1165
        %v1214 = vadd.f32 %v1150, %v1166
        %v1215 = vadd.f32 %v1151, %v1167
        %v1216 = vadd.f32 %v1152, %v1168
        %v1217 = vadd.f32 %v1153, %v1169
        %v1218 = vadd.f32 %v1154, %v1170
        %v1219 = vadd.f32 %v1155, %v1171
        %v1220 = vadd.f32 %v1156, %v1172
        %v1221 = vadd.f32 %v1157, %v1173
        %v1222 = vadd.f32 %v1174, %v1190
        %v1223 = vadd.f32 %v1175, %v1191
        %v1224 = vadd.f32 %v1176, %v1192
        %v1225 = vadd.f32 %v1177, %v1193
        %v1226 = vadd.f32 %v1178, %v1194
        %v1227 = vadd.f32 %v1179, %v1195
        %v1228 = vadd.f32 %v1180, %v1196
        %v1229 = vadd.f32 %v1181, %v1197
        %v1230 = vadd.f32 %v1182, %v1198
        %v1231 = vadd.f32 %v1183, %v1199
        %v1232 = vadd.f32 %v1184, %v1200
        %v1233 = vadd.f32 %v1185, %v1201
        %v1234 = vadd.f32 %v1186, %v1202
        %v1235 = vadd.f32 %v1187, %v1203
        %v1236 = vadd.f32 %v1188, %v1204
        %v1237 = vadd.f32 %v1189, %v1205
        %v1238 = vadd.f32 %v1206, %v1222
        %v1239 = vadd.f32 %v1207, %v1223
        %v1240 = vadd.f32 %v1208, %v1224
        %v1241 = vadd.f32 %v1209, %v1225
        %v1242 = vadd.f32 %v1210, %v1226
        %v1243 = vadd.f32 %v1211, %v1227
        %v1244 = vadd.f32 %v1212, %v1228
        %v1245 = vadd.f32 %v1213, %v1229
        %v1246 = vadd.f32 %v1214, %v1230
        %v1247 = vadd.f32 %v1215, %v1231
        %v1248 = vadd.f32 %v1216, %v1232
        %v1249 = vadd.f32 %v1217, %v1233
        %v1250 = vadd.f32 %v1218, %v1234
        %v1251 = vadd.f32 %v1219, %v1235
        %v1252 = vadd.f32 %v1220, %v1236
        %v1253 = vadd.f32 %v1221, %v1237
        %v1254 = vadd.f32 %v1238, %v1126
        %v1255 = vadd.f32 %v1239, %v1127
        %v1256 = vadd.f32 %v1240, %v1128
        %v1257 = vadd.f32 %v1241, %v1129
        %v1258 = vadd.f32 %v1242, %v1130
        %v1259 = vadd.f32 %v1243, %v1131
        %v1260 = vadd.f32 %v1244, %v1132
        %v1261 = vadd.f32 %v1245, %v1133
        %v1262 = vadd.f32 %v1246, %v1134
        %v1263 = vadd.f32 %v1247, %v1135
        %v1264 = vadd.f32 %v1248, %v1136
        %v1265 = vadd.f32 %v1249, %v1137
        %v1266 = vadd.f32 %v1250, %v1138
        %v1267 = vadd.f32 %v1251, %v1139
        %v1268 = vadd.f32 %v1252, %v1140
        %v1269 = vadd.f32 %v1253, %v1141
        %v1270 = vld [vmem:[#allocation10] sm:$0x1]
        %v1272 = vlaneseq
        %v1273 = vshrl.u32 %v1272, 7
        %v1274 = vsub.s32 0, %v1273
        %v1275 = vrot.slane %v1270, %v1274
        %v1277 = vadd.f32 %v1254, %v1275
        %v1278 = vadd.f32 %v1255, %v1275
        %v1279 = vadd.f32 %v1256, %v1275
        %v1280 = vadd.f32 %v1257, %v1275
        %v1281 = vadd.f32 %v1258, %v1275
        %v1282 = vadd.f32 %v1259, %v1275
        %v1283 = vadd.f32 %v1260, %v1275
        %v1284 = vadd.f32 %v1261, %v1275
        %v1285 = vadd.f32 %v1262, %v1275
        %v1286 = vadd.f32 %v1263, %v1275
        %v1287 = vadd.f32 %v1264, %v1275
        %v1288 = vadd.f32 %v1265, %v1275
        %v1289 = vadd.f32 %v1266, %v1275
        %v1290 = vadd.f32 %v1267, %v1275
        %v1291 = vadd.f32 %v1268, %v1275
        %v1292 = vadd.f32 %v1269, %v1275
        %v1293 = vsub.f32 0.0, %v1277
        %v1294 = vsub.f32 0.0, %v1278
        %v1295 = vsub.f32 0.0, %v1279
        %v1296 = vsub.f32 0.0, %v1280
        %v1297 = vsub.f32 0.0, %v1281
        %v1298 = vsub.f32 0.0, %v1282
        %v1299 = vsub.f32 0.0, %v1283
        %v1300 = vsub.f32 0.0, %v1284
        %v1301 = vsub.f32 0.0, %v1285
        %v1302 = vsub.f32 0.0, %v1286
        %v1303 = vsub.f32 0.0, %v1287
        %v1304 = vsub.f32 0.0, %v1288
        %v1305 = vsub.f32 0.0, %v1289
        %v1306 = vsub.f32 0.0, %v1290
        %v1307 = vsub.f32 0.0, %v1291
        %v1308 = vsub.f32 0.0, %v1292
        %v1309 = vmul.f32 %v1293, 1.442695
        %v1310 = vpow.pop %v1309
        %v1311 = vmul.f32 %v1294, 1.442695
        %v1312 = vpow.pop %v1311
        %v1313 = vmul.f32 %v1295, 1.442695
        %v1314 = vpow.pop %v1313
        %v1315 = vmul.f32 %v1296, 1.442695
        %v1316 = vpow.pop %v1315
        %v1317 = vmul.f32 %v1297, 1.442695
        %v1318 = vpow.pop %v1317
        %v1319 = vmul.f32 %v1298, 1.442695
        %v1320 = vpow.pop %v1319
        %v1321 = vmul.f32 %v1299, 1.442695
        %v1322 = vpow.pop %v1321
        %v1323 = vmul.f32 %v1300, 1.442695
        %v1324 = vpow.pop %v1323
        %v1325 = vmul.f32 %v1301, 1.442695
        %v1326 = vpow.pop %v1325
        %v1327 = vmul.f32 %v1302, 1.442695
        %v1328 = vpow.pop %v1327
        %v1329 = vmul.f32 %v1303, 1.442695
        %v1330 = vpow.pop %v1329
        %v1331 = vmul.f32 %v1304, 1.442695
        %v1332 = vpow.pop %v1331
        %v1333 = vmul.f32 %v1305, 1.442695
        %v1334 = vpow.pop %v1333
        %v1335 = vmul.f32 %v1306, 1.442695
        %v1336 = vpow.pop %v1335
        %v1337 = vmul.f32 %v1307, 1.442695
        %v1338 = vpow.pop %v1337
        %v1339 = vmul.f32 %v1308, 1.442695
        %v1340 = vpow.pop %v1339
        %v1341 = vadd.f32 %v1310, 1.0
        %v1342 = vadd.f32 %v1312, 1.0
        %v1343 = vadd.f32 %v1314, 1.0
        %v1344 = vadd.f32 %v1316, 1.0
        %v1345 = vadd.f32 %v1318, 1.0
        %v1346 = vadd.f32 %v1320, 1.0
        %v1347 = vadd.f32 %v1322, 1.0
        %v1348 = vadd.f32 %v1324, 1.0
        %v1349 = vadd.f32 %v1326, 1.0
        %v1350 = vadd.f32 %v1328, 1.0
        %v1351 = vadd.f32 %v1330, 1.0
        %v1352 = vadd.f32 %v1332, 1.0
        %v1353 = vadd.f32 %v1334, 1.0
        %v1354 = vadd.f32 %v1336, 1.0
        %v1355 = vadd.f32 %v1338, 1.0
        %v1356 = vadd.f32 %v1340, 1.0
        %v1357 = vrcp.pop %v1341
        %v1358 = vmul.f32 %v1277, %v1357
        %v1359 = vrcp.pop %v1342
        %v1360 = vmul.f32 %v1278, %v1359
        %v1361 = vrcp.pop %v1343
        %v1362 = vmul.f32 %v1279, %v1361
        %v1363 = vrcp.pop %v1344
        %v1364 = vmul.f32 %v1280, %v1363
        %v1365 = vrcp.pop %v1345
        %v1366 = vmul.f32 %v1281, %v1365
        %v1367 = vrcp.pop %v1346
        %v1368 = vmul.f32 %v1282, %v1367
        %v1369 = vrcp.pop %v1347
        %v1370 = vmul.f32 %v1283, %v1369
        %v1371 = vrcp.pop %v1348
        %v1372 = vmul.f32 %v1284, %v1371
        %v1373 = vrcp.pop %v1349
        %v1374 = vmul.f32 %v1285, %v1373
        %v1375 = vrcp.pop %v1350
        %v1376 = vmul.f32 %v1286, %v1375
        %v1377 = vrcp.pop %v1351
        %v1378 = vmul.f32 %v1287, %v1377
        %v1379 = vrcp.pop %v1352
        %v1380 = vmul.f32 %v1288, %v1379
        %v1381 = vrcp.pop %v1353
        %v1382 = vmul.f32 %v1289, %v1381
        %v1383 = vrcp.pop %v1354
        %v1384 = vmul.f32 %v1290, %v1383
        %v1385 = vrcp.pop %v1355
        %v1386 = vmul.f32 %v1291, %v1385
        %v1387 = vrcp.pop %v1356
        %v1388 = vmul.f32 %v1292, %v1387
        %v1389 = vld [vmem:[#allocation11] sm:$0xff]
        %v1390 = vld [vmem:[#allocation11 + $0x8] sm:$0xff]
        %v1391 = vld [vmem:[#allocation11 + $0x10] sm:$0xff]
        %v1392 = vld [vmem:[#allocation11 + $0x18] sm:$0xff]
        %v1393 = vld [vmem:[#allocation11 + $0x20] sm:$0xff]
        %v1394 = vld [vmem:[#allocation11 + $0x28] sm:$0xff]
        %v1395 = vld [vmem:[#allocation11 + $0x30] sm:$0xff]
        %v1396 = vld [vmem:[#allocation11 + $0x38] sm:$0xff]
        %v1397 = vld [vmem:[#allocation11 + $0x40] sm:$0xff]
        %v1398 = vld [vmem:[#allocation11 + $0x48] sm:$0xff]
        %v1399 = vld [vmem:[#allocation11 + $0x50] sm:$0xff]
        %v1400 = vld [vmem:[#allocation11 + $0x58] sm:$0xff]
        %v1401 = vld [vmem:[#allocation11 + $0x60] sm:$0xff]
        %v1402 = vld [vmem:[#allocation11 + $0x68] sm:$0xff]
        %v1403 = vld [vmem:[#allocation11 + $0x70] sm:$0xff]
        %v1404 = vld [vmem:[#allocation11 + $0x78] sm:$0xff]
        %1405 = vmatprep.subr.mxu0 0.0
        %1406 = vmatpush1.msra.mxu0 %v1389
        %1407 = vmatprep.subr.mxu0 0.0
        %1408 = vmatpush1.msra.mxu0 %v1390
        %1409 = vmatprep.subr.mxu0 0.0
        %1410 = vmatpush1.msra.mxu0 %v1391
        %1411 = vmatprep.subr.mxu0 0.0
        %1412 = vmatpush1.msra.mxu0 %v1392
        %1413 = vmatprep.subr.mxu0 0.0
        %1414 = vmatpush1.msra.mxu0 %v1393
        %1415 = vmatprep.subr.mxu0 0.0
        %1416 = vmatpush1.msra.mxu0 %v1394
        %1417 = vmatprep.subr.mxu0 0.0
        %1418 = vmatpush1.msra.mxu0 %v1395
        %1419 = vmatprep.subr.mxu0 0.0
        %1420 = vmatpush1.msra.mxu0 %v1396
        %1421 = vmatprep.subr.mxu0 0.0
        %1422 = vmatpush1.msra.mxu0 %v1397
        %1423 = vmatprep.subr.mxu0 0.0
        %1424 = vmatpush1.msra.mxu0 %v1398
        %1425 = vmatprep.subr.mxu0 0.0
        %1426 = vmatpush1.msra.mxu0 %v1399
        %1427 = vmatprep.subr.mxu0 0.0
        %1428 = vmatpush1.msra.mxu0 %v1400
        %1429 = vmatprep.subr.mxu0 0.0
        %1430 = vmatpush1.msra.mxu0 %v1401
        %1431 = vmatprep.subr.mxu0 0.0
        %1432 = vmatpush1.msra.mxu0 %v1402
        %1433 = vmatprep.subr.mxu0 0.0
        %1434 = vmatpush1.msra.mxu0 %v1403
        %1435 = vmatprep.subr.mxu0 0.0
        %1436 = vmatpush1.msra.mxu0 %v1404
        %1437 = vmatprep.subr.mxu0 0.0
        %1438 = vmatpush1.msra.mxu0 0.0
        %1439 = vmatprep.subr.mxu0 0.0
        %1440 = vmatpush1.msra.mxu0 0.0
        %1441 = vmatprep.subr.mxu0 0.0
        %1442 = vmatpush1.msra.mxu0 0.0
        %1443 = vmatprep.subr.mxu0 0.0
        %1444 = vmatpush1.msra.mxu0 0.0
        %1445 = vmatprep.subr.mxu0 0.0
        %1446 = vmatpush1.msra.mxu0 0.0
        %1447 = vmatprep.subr.mxu0 0.0
        %1448 = vmatpush1.msra.mxu0 0.0
        %1449 = vmatprep.subr.mxu0 0.0
        %1450 = vmatpush1.msra.mxu0 0.0
        %1451 = vmatprep.subr.mxu0 0.0
        %1452 = vmatpush1.msra.mxu0 0.0
        %1453 = vmatprep.subr.mxu0 0.0
        %1454 = vmatpush1.msra.mxu0 0.0
        %1455 = vmatprep.subr.mxu0 0.0
        %1456 = vmatpush1.msra.mxu0 0.0
        %1457 = vmatprep.subr.mxu0 0.0
        %1458 = vmatpush1.msra.mxu0 0.0
        %1459 = vmatprep.subr.mxu0 0.0
        %1460 = vmatpush1.msra.mxu0 0.0
        %1461 = vmatprep.subr.mxu0 0.0
        %1462 = vmatpush1.msra.mxu0 0.0
        %1463 = vmatprep.subr.mxu0 0.0
        %1464 = vmatpush1.msra.mxu0 0.0
        %1465 = vmatprep.subr.mxu0 0.0
        %1466 = vmatpush1.msra.mxu0 0.0
        %1467 = vmatprep.subr.mxu0 0.0
        %1468 = vmatpush1.msra.mxu0 0.0
        %1469 = vmatprep.mubr.f32.mxu0 0.0
        %1470 = vmatmul.mubr.f32.gmra.mrb[0].mxu0 %v1358
        %v1471 = vpop.f32.mrb[0].mxu0
        %v1472 = vadd.f32 0.0, %v1471
        %v1473 = vpop.f32.mrb[0].mxu0
        %1474 = vmatprep.mubr.f32.mxu0 0.0
        %1475 = vmatmul.mubr.f32.gmra.mrb[0].mxu0 %v1360
        %v1476 = vpop.f32.mrb[0].mxu0
        %v1477 = vadd.f32 0.0, %v1476
        %v1478 = vpop.f32.mrb[0].mxu0
        %1479 = vmatprep.mubr.f32.mxu0 0.0
        %1480 = vmatmul.mubr.f32.gmra.mrb[0].mxu0 %v1362
        %v1481 = vpop.f32.mrb[0].mxu0
        %v1482 = vadd.f32 0.0, %v1481
        %v1483 = vpop.f32.mrb[0].mxu0
        %1484 = vmatprep.mubr.f32.mxu0 0.0
        %1485 = vmatmul.mubr.f32.gmra.mrb[0].mxu0 %v1364
        %v1486 = vpop.f32.mrb[0].mxu0
        %v1487 = vadd.f32 0.0, %v1486
        %v1488 = vpop.f32.mrb[0].mxu0
        %1489 = vmatprep.mubr.f32.mxu0 0.0
        %1490 = vmatmul.mubr.f32.gmra.mrb[0].mxu0 %v1366
        %v1491 = vpop.f32.mrb[0].mxu0
        %v1492 = vadd.f32 0.0, %v1491
        %v1493 = vpop.f32.mrb[0].mxu0
        %1494 = vmatprep.mubr.f32.mxu0 0.0
        %1495 = vmatmul.mubr.f32.gmra.mrb[0].mxu0 %v1368
        %v1496 = vpop.f32.mrb[0].mxu0
        %v1497 = vadd.f32 0.0, %v1496
        %v1498 = vpop.f32.mrb[0].mxu0
        %1499 = vmatprep.mubr.f32.mxu0 0.0
        %1500 = vmatmul.mubr.f32.gmra.mrb[0].mxu0 %v1370
        %v1501 = vpop.f32.mrb[0].mxu0
        %v1502 = vadd.f32 0.0, %v1501
        %v1503 = vpop.f32.mrb[0].mxu0
        %1504 = vmatprep.mubr.f32.mxu0 0.0
        %1505 = vmatmul.mubr.f32.gmra.mrb[0].mxu0 %v1372
        %v1506 = vpop.f32.mrb[0].mxu0
        %v1507 = vadd.f32 0.0, %v1506
        %v1508 = vpop.f32.mrb[0].mxu0
        %1509 = vmatprep.mubr.f32.mxu0 0.0
        %1510 = vmatmul.mubr.f32.gmra.mrb[0].mxu0 %v1374
        %v1511 = vpop.f32.mrb[0].mxu0
        %v1512 = vadd.f32 0.0, %v1511
        %v1513 = vpop.f32.mrb[0].mxu0
        %1514 = vmatprep.mubr.f32.mxu0 0.0
        %1515 = vmatmul.mubr.f32.gmra.mrb[0].mxu0 %v1376
        %v1516 = vpop.f32.mrb[0].mxu0
        %v1517 = vadd.f32 0.0, %v1516
        %v1518 = vpop.f32.mrb[0].mxu0
        %1519 = vmatprep.mubr.f32.mxu0 0.0
        %1520 = vmatmul.mubr.f32.gmra.mrb[0].mxu0 %v1378
        %v1521 = vpop.f32.mrb[0].mxu0
        %v1522 = vadd.f32 0.0, %v1521
        %v1523 = vpop.f32.mrb[0].mxu0
        %1524 = vmatprep.mubr.f32.mxu0 0.0
        %1525 = vmatmul.mubr.f32.gmra.mrb[0].mxu0 %v1380
        %v1526 = vpop.f32.mrb[0].mxu0
        %v1527 = vadd.f32 0.0, %v1526
        %v1528 = vpop.f32.mrb[0].mxu0
        %1529 = vmatprep.mubr.f32.mxu0 0.0
        %1530 = vmatmul.mubr.f32.gmra.mrb[0].mxu0 %v1382
        %v1531 = vpop.f32.mrb[0].mxu0
        %v1532 = vadd.f32 0.0, %v1531
        %v1533 = vpop.f32.mrb[0].mxu0
        %1534 = vmatprep.mubr.f32.mxu0 0.0
        %1535 = vmatmul.mubr.f32.gmra.mrb[0].mxu0 %v1384
        %v1536 = vpop.f32.mrb[0].mxu0
        %v1537 = vadd.f32 0.0, %v1536
        %v1538 = vpop.f32.mrb[0].mxu0
        %1539 = vmatprep.mubr.f32.mxu0 0.0
        %1540 = vmatmul.mubr.f32.gmra.mrb[0].mxu0 %v1386
        %v1541 = vpop.f32.mrb[0].mxu0
        %v1542 = vadd.f32 0.0, %v1541
        %v1543 = vpop.f32.mrb[0].mxu0
        %1544 = vmatprep.mubr.f32.mxu0 0.0
        %1545 = vmatmul.mubr.f32.gmra.mrb[0].mxu0 %v1388
        %v1546 = vpop.f32.mrb[0].mxu0
        %v1547 = vadd.f32 0.0, %v1546
        %v1548 = vpop.f32.mrb[0].mxu0
        %1549 = vdwg.mxu0
        %v1550 = vld [vmem:[#allocation13] sm:$0x1]
        %v1552 = vlaneseq
        %v1553 = vshrl.u32 %v1552, 7
        %v1554 = vsub.s32 0, %v1553
        %v1555 = vrot.slane %v1550, %v1554
        %v1557 = vadd.f32 %v1472, %v1555
        %v1558 = vadd.f32 %v1477, %v1555
        %v1559 = vadd.f32 %v1482, %v1555
        %v1560 = vadd.f32 %v1487, %v1555
        %v1561 = vadd.f32 %v1492, %v1555
        %v1562 = vadd.f32 %v1497, %v1555
        %v1563 = vadd.f32 %v1502, %v1555
        %v1564 = vadd.f32 %v1507, %v1555
        %v1565 = vadd.f32 %v1512, %v1555
        %v1566 = vadd.f32 %v1517, %v1555
        %v1567 = vadd.f32 %v1522, %v1555
        %v1568 = vadd.f32 %v1527, %v1555
        %v1569 = vadd.f32 %v1532, %v1555
        %v1570 = vadd.f32 %v1537, %v1555
        %v1571 = vadd.f32 %v1542, %v1555
        %v1572 = vadd.f32 %v1547, %v1555
        %s1573 = scalar_lea.vmem [#allocation2], 24
        %v1574 = vld [vmem:[%s1573 + $0x1] sm:$0xff]
        %v1575 = vld [vmem:[%s1573 + $0x9] sm:$0xff]
        %v1576 = vld [vmem:[%s1573 + $0x19] sm:$0xff]
        %v1577 = vld [vmem:[%s1573 + $0x21] sm:$0xff]
        %v1578 = vld [vmem:[%s1573 + $0x31] sm:$0xff]
        %v1579 = vld [vmem:[%s1573 + $0x39] sm:$0xff]
        %v1580 = vld [vmem:[%s1573 + $0x49] sm:$0xff]
        %v1581 = vld [vmem:[%s1573 + $0x51] sm:$0xff]
        %v1582 = vld [vmem:[%s1573 + $0x61] sm:$0xff]
        %v1583 = vld [vmem:[%s1573 + $0x69] sm:$0xff]
        %v1584 = vld [vmem:[%s1573 + $0x79] sm:$0xff]
        %v1585 = vld [vmem:[%s1573 + $0x81] sm:$0xff]
        %v1586 = vld [vmem:[%s1573 + $0x91] sm:$0xff]
        %v1587 = vld [vmem:[%s1573 + $0x99] sm:$0xff]
        %v1588 = vld [vmem:[%s1573 + $0xa9] sm:$0xff]
        %v1589 = vld [vmem:[%s1573 + $0xb1] sm:$0xff]
        %v1590 = vadd.f32 %v1557, %v1574
        %v1591 = vadd.f32 %v1558, %v1575
        %v1592 = vadd.f32 %v1559, %v1576
        %v1593 = vadd.f32 %v1560, %v1577
        %v1594 = vadd.f32 %v1561, %v1578
        %v1595 = vadd.f32 %v1562, %v1579
        %v1596 = vadd.f32 %v1563, %v1580
        %v1597 = vadd.f32 %v1564, %v1581
        %v1598 = vadd.f32 %v1565, %v1582
        %v1599 = vadd.f32 %v1566, %v1583
        %v1600 = vadd.f32 %v1567, %v1584
        %v1601 = vadd.f32 %v1568, %v1585
        %v1602 = vadd.f32 %v1569, %v1586
        %v1603 = vadd.f32 %v1570, %v1587
        %v1604 = vadd.f32 %v1571, %v1588
        %v1605 = vadd.f32 %v1572, %v1589
        %1606 = vst [vmem:[%s286] sm:$0xff] %v1590
        %1607 = vst [vmem:[%s286 + $0x8] sm:$0xff] %v1591
        %1608 = vst [vmem:[%s286 + $0x10] sm:$0xff] %v1592
        %1609 = vst [vmem:[%s286 + $0x18] sm:$0xff] %v1593
        %1610 = vst [vmem:[%s286 + $0x20] sm:$0xff] %v1594
        %1611 = vst [vmem:[%s286 + $0x28] sm:$0xff] %v1595
        %1612 = vst [vmem:[%s286 + $0x30] sm:$0xff] %v1596
        %1613 = vst [vmem:[%s286 + $0x38] sm:$0xff] %v1597
        %1614 = vst [vmem:[%s286 + $0x40] sm:$0xff] %v1598
        %1615 = vst [vmem:[%s286 + $0x48] sm:$0xff] %v1599
        %1616 = vst [vmem:[%s286 + $0x50] sm:$0xff] %v1600
        %1617 = vst [vmem:[%s286 + $0x58] sm:$0xff] %v1601
        %1618 = vst [vmem:[%s286 + $0x60] sm:$0xff] %v1602
        %1619 = vst [vmem:[%s286 + $0x68] sm:$0xff] %v1603
        %1620 = vst [vmem:[%s286 + $0x70] sm:$0xff] %v1604
        %1621 = vst [vmem:[%s286 + $0x78] sm:$0xff] %v1605
        %s1622 = sand.u32 %s150, 1
        %s1623 = scalar_lea.sflag [#allocation7], %s1622
        %s1624 = sand.u32 %s150, 1
        %s1625 = smul.addr %s1624, 128
        %s1626 = scalar_lea.vmem [#allocation14], %s1625
        // Predicated region
        $region65: #{tpu_custom_call.1} parent=39 // pred_check
          %p1627 = pneg %p160
        $region66: #{tpu_custom_call.1} parent=39 // pred_check_branch
          %1629 = sbr.rel (%p1627) target = $region68
        $region67: #{tpu_custom_call.1} parent=39 // pred_region
          %s1630 = smul.u32 8, %s28
          %s1632 = ssub.s32 2048, 2048
          %1633 = vsyncadd %s1623, %s1632
          %s1634 = smul.addr %s1630, 2
          %s1635 = smul.addr %s27, 32
          %s1636 = sadd.s32 %s1634, %s1635
          %s1637 = smul.addr %s1636, 128
          %s1638 = scalar_lea.hbm %s6, %s1637
          %s1639 = sshll.u32 %s1626, 4
          %s1640 = int_to_ptr.vmem [resolvable:$true] %s1639
          %1645 = dma.vmem_to_hbm [thread:$0]  %s1640, 2048, %s1638, %s1623, 128, 128, 8
        $region68: #{tpu_custom_call.1} parent=39 // pred_fallthru
          _
      $region40: #{tpu_custom_call.1} parent=5 // pred_fallthru
        _
      %p1646 = scmp.le.s32.totalorder 2, %s18
      // Predicated region
      $region69: #{tpu_custom_call.1} parent=5 // pred_check
        %p1647 = pneg %p1646
      $region70: #{tpu_custom_call.1} parent=5 // pred_check_branch
        %1649 = sbr.rel (%p1647) target = $region72
      $region71: #{tpu_custom_call.1} parent=5 // pred_region
        %s1650 = ssub.s32 %s18, 2
        // Predicated region
        $region73: #{tpu_custom_call.1} parent=71 // pred_check
          %p1651 = pneg %p166
        $region74: #{tpu_custom_call.1} parent=71 // pred_check_branch
          %1653 = sbr.rel (%p1651) target = $region76
        $region75: #{tpu_custom_call.1} parent=71 // pred_region
          %s1654 = sand.u32 %s151, 1
          %s1655 = scalar_lea.sflag [#allocation7], %s1654
          %s1656 = sand.u32 %s151, 1
          %s1657 = smul.addr %s1656, 128
          %s1658 = scalar_lea.vmem [#allocation14], %s1657
          %1659 = dma.done %s1655, 2048
        $region76: #{tpu_custom_call.1} parent=71 // pred_fallthru
          _
      $region72: #{tpu_custom_call.1} parent=5 // pred_fallthru
        _
    $region6: #{tpu_custom_call.1} parent=1 // loop_footer
      %s22 = sadd.s32 1, %s18
    $region7: #{tpu_custom_call.1} parent=1 // loop_footer_branch
      %17 = sbr.rel target = $region3
    $region8: #{tpu_custom_call.1} parent=1 // loop_exit
      _
    %1660 = vsyncpa [#allocation6], 1
    %s1661 = scalar_lea.sflag [#allocation6], 1
    %1662 = vsyncpa %s1661, 1
    %1663 = vsyncpa [#allocation9], 1
    %1664 = vsyncpa [#allocation12], 1
    %1665 = vsyncpa [#allocation7], 1
    %s1666 = scalar_lea.sflag [#allocation7], 1
    %1667 = vsyncpa %s1666, 1
  %1668 = vsyncmov [#allocation4]
  %s1669 = vpop.sfrf %1668
  %p1670 = scmp.eq.s32.totalorder %s1669, 0
  %p1671 = pneg %p1670
  %1673 = shalt.err (%p1671)

</llo_original>
